<compile_context>
chip_gen: v5e
topology: v5e:2x2
jax: 0.10.0
libtpu: 0.0.40
codegen_flags: <defaults>
</compile_context>

<pallas_src>
import functools

import jax
import jax.numpy as jnp
from jax.experimental import pallas as pl
from jax.experimental.pallas import tpu as pltpu


def dwconv_kernel(x_ref, w_ref, b_ref, o_ref, top_ref, bot_ref, *, H, W, Bb):
    """3x3 depthwise conv (stride 1, pad 1) on Bb batches of flat tokens.

    x_ref : (Bb, HW, C)       tokens, channel-last
    w_ref : (9, C)            depthwise taps, row k = ki*3 + kj (ki/kj in 0..2)
    b_ref : (1, C)            bias
    o_ref : (Bb, HW, C)
    top_ref, bot_ref : VMEM ((H+1)*W, C) f32  row-padded staging buffers
    """
    HW = H * W
    C = x_ref.shape[-1]

    # Column index per token -> the ONLY masks needed (row padding is handled
    # by the zero rows staged in the scratch buffers below).
    col = jax.lax.broadcasted_iota(jnp.int32, (HW, 1), 0) % W
    not_first_col = col >= 1          # dj = -1 tap valid
    not_last_col = col <= W - 2       # dj = +1 tap valid

    w = [w_ref[k, :].astype(jnp.float32) for k in range(9)]   # nine (C,) rows
    bias = b_ref[...].astype(jnp.float32)                     # (1, C)

    # Zero the pad rows of the staging buffers once per grid step (tiny: W*C).
    zrow = jnp.zeros((W, C), jnp.float32)
    top_ref[pl.ds(0, W), :] = zrow       # pad row ABOVE the image
    bot_ref[pl.ds(HW, W), :] = zrow      # pad row BELOW the image

    for b in range(Bb):                  # Bb is small & static -> unrolled
        x = x_ref[b].astype(jnp.float32)                         # (HW, C)

        # Two column-shifted copies (2 XLU rolls total), masked once each and
        # reused by all three kernel rows.
        xm = jnp.where(not_first_col, pltpu.roll(x, shift=1, axis=0), 0.0)      # x[t-1]
        xp = jnp.where(not_last_col, pltpu.roll(x, shift=HW - 1, axis=0), 0.0)  # x[t+1]

        # Per-kernel-row weighted combinations (independent FMA chains).
        combo_top = xm * w[0] + x * w[1] + xp * w[2]   # needs value at t - W
        combo_mid = xm * w[3] + x * w[4] + xp * w[5]   # used at t
        combo_bot = xm * w[6] + x * w[7] + xp * w[8]   # needs value at t + W

        # Stage into the row-padded scratch so the +/-W row shifts become
        # plain sublane-offset loads (zero pad rows == conv zero padding).
        # NOTE: offsets are multiples of W; with W % 8 == 0 they stay
        # sublane-aligned (true for typical ViT feature maps).
        top_ref[pl.ds(W, HW), :] = combo_top
        bot_ref[pl.ds(0, HW), :] = combo_bot

        acc = combo_mid + bias
        acc = acc + top_ref[pl.ds(0, HW), :]   # combo_top shifted down one row
        acc = acc + bot_ref[pl.ds(W, HW), :]   # combo_bot shifted up one row

        o_ref[b] = acc.astype(o_ref.dtype)


def dwconv_tokens(x_tokens, dw_weight, dw_bias, *, H, W, block_batch=None):
    """DWConv.forward: (B, N, C) tokens -> (B, N, C) tokens, N = H*W.

    dw_weight : PyTorch depthwise layout (C, 1, 3, 3)
    dw_bias   : (C,)
    """
    B, N, C = x_tokens.shape
    assert N == H * W, "token count must equal H*W"

    # (C, 1, 3, 3) -> (9, C) with row k = ki*3 + kj (done here so callers
    # cannot get the layout wrong).
    w9 = jnp.transpose(dw_weight.reshape(C, 9), (1, 0)).astype(jnp.float32)
    b2 = dw_bias.reshape(1, C).astype(jnp.float32)

    # Lane-density guard: pad channels to a multiple of 128.  Padded channels
    # get zero input/weight/bias -> zero output, sliced off at the end.
    LANE = 128
    c_pad = (-C) % LANE
    if c_pad:
        x_in = jnp.pad(x_tokens, ((0, 0), (0, 0), (0, c_pad)))
        w9 = jnp.pad(w9, ((0, 0), (0, c_pad)))
        b2 = jnp.pad(b2, ((0, 0), (0, c_pad)))
    else:
        x_in = x_tokens
    Cp = C + c_pad

    # Choose how many batch elements each grid step processes: target ~2 MB
    # per block to amortise per-step overhead, keep >= 2 grid steps for the
    # two v7x TensorCores, require divisibility.
    if block_batch is None:
        per_batch = N * Cp * x_in.dtype.itemsize
        bb = max(1, min(B, (2 * 1024 * 1024) // max(per_batch, 1)))
        while bb > 1 and (B % bb != 0 or B // bb < 2):
            bb -= 1
        block_batch = bb
    assert B % block_batch == 0
    grid = (B // block_batch,)

    kernel = functools.partial(dwconv_kernel, H=H, W=W, Bb=block_batch)
    # TODO(synk): for real ViT shapes (e.g. HW=56*56, C>=512) add a row-tile
    #             grid axis with a 1-row halo and set vmem_limit_bytes so the
    #             double-buffered blocks stay within v7x's 64 MiB VMEM.
    out = pl.pallas_call(
        kernel,
        out_shape=jax.ShapeDtypeStruct((B, N, Cp), x_in.dtype),
        grid=grid,
        in_specs=[
            pl.BlockSpec((block_batch, N, Cp), lambda i: (i, 0, 0)),
            pl.BlockSpec((9, Cp), lambda i: (0, 0)),
            pl.BlockSpec((1, Cp), lambda i: (0, 0)),
        ],
        out_specs=pl.BlockSpec((block_batch, N, Cp), lambda i: (i, 0, 0)),
        scratch_shapes=[
            pltpu.VMEM(((H + 1) * W, Cp), jnp.float32),
            pltpu.VMEM(((H + 1) * W, Cp), jnp.float32),
        ],
        compiler_params=pltpu.CompilerParams(
            dimension_semantics=("parallel",)),
    )(x_in, w9, b2)

    return out[..., :C] if c_pad else out


def dwconv_ref(x_tokens, dw_weight, dw_bias, *, H, W):
    """Pure-JAX reference (same math as nn.Conv2d(C, C, 3, 1, 1, groups=C))."""
    B, N, C = x_tokens.shape
    w9 = dw_weight.reshape(C, 9).T                       # (9, C)
    xs = x_tokens.reshape(B, H, W, C)
    xpad = jnp.pad(xs, ((0, 0), (1, 1), (1, 1), (0, 0)))
    acc = jnp.broadcast_to(dw_bias.reshape(1, 1, 1, C), (B, H, W, C))
    for ki in range(3):
        for kj in range(3):
            acc = acc + xpad[:, ki:ki + H, kj:kj + W, :] * w9[ki * 3 + kj]
    return acc.reshape(B, N, C)


if __name__ == "__main__":
    key = jax.random.PRNGKey(0)

    # Primary check: C = 128 (lane-dense), 16x16 tokens, batch 2.
    B, C, H, W = 2, 128, 16, 16
    N = H * W
    k1, k2, k3 = jax.random.split(key, 3)
    x = jax.random.normal(k1, (B, N, C), jnp.float32)
    w = 0.1 * jax.random.normal(k2, (C, 1, 3, 3), jnp.float32)   # PyTorch layout
    b = 0.01 * jax.random.normal(k3, (C,), jnp.float32)

    out = dwconv_tokens(x, w, b, H=H, W=W)
    jax.block_until_ready(out)
    assert out.shape == (B, N, C) and out.dtype == jnp.float32
    err = float(jnp.max(jnp.abs(out - dwconv_ref(x, w, b, H=H, W=W))))
    assert err < 1e-4, f"max abs error {err}"

    # Secondary check: channel count that is NOT a multiple of 128 (exercises
    # the lane-padding path) and a smaller spatial grid.
    B2, C2, H2, W2 = 2, 192, 8, 8
    N2 = H2 * W2
    k4, k5, k6 = jax.random.split(jax.random.PRNGKey(1), 3)
    x2 = jax.random.normal(k4, (B2, N2, C2), jnp.float32)
    w2 = 0.1 * jax.random.normal(k5, (C2, 1, 3, 3), jnp.float32)
    b2 = 0.01 * jax.random.normal(k6, (C2,), jnp.float32)

    out2 = dwconv_tokens(x2, w2, b2, H=H2, W=W2)
    jax.block_until_ready(out2)
    assert out2.shape == (B2, N2, C2)
    err2 = float(jnp.max(jnp.abs(out2 - dwconv_ref(x2, w2, b2, H=H2, W=W2))))
    assert err2 < 1e-4, f"max abs error {err2}"

    print("KERNEL_OK")
</pallas_src>

<mosaic_0001>
module attributes {stable_mosaic.version = 11 : i64} {
  func.func @dwconv_kernel(%arg0: i32, %arg1: memref<1x256x128xf32, #tpu.memory_space<vmem>>, %arg2: memref<9x128xf32, #tpu.memory_space<vmem>>, %arg3: memref<1x128xf32, #tpu.memory_space<vmem>>, %arg4: memref<1x256x128xf32, #tpu.memory_space<vmem>>, %arg5: memref<272x128xf32, #tpu.memory_space<vmem>>, %arg6: memref<272x128xf32, #tpu.memory_space<vmem>>) attributes {dimension_semantics = [#tpu.dimension_semantics<parallel>], iteration_bounds = array<i64: 2>, scalar_prefetch = 0 : i64, scratch_operands = 2 : i64, tpu.core_type = #tpu.core_type<tc>, window_params = [{transform_indices = @transform_0, window_bounds = array<i64: 1, 256, 128>}, {pipeline_mode = #tpu.pipeline_mode<synchronous>, transform_indices = @transform_1, window_bounds = array<i64: 9, 128>}, {pipeline_mode = #tpu.pipeline_mode<synchronous>, transform_indices = @transform_2, window_bounds = array<i64: 1, 128>}, {transform_indices = @transform_3, window_bounds = array<i64: 1, 256, 128>}]} {
    %0 = tpu.iota {dimensions = array<i32: 0>} : vector<256x1xi32>
    %c16_i32 = arith.constant 16 : i32
    %c0_i32 = arith.constant 0 : i32
    %1 = arith.cmpi eq, %c16_i32, %c0_i32 : i32
    %c1_i32 = arith.constant 1 : i32
    %2 = arith.select %1, %c1_i32, %c16_i32 : i32
    %3 = vector.broadcast %2 : i32 to vector<256x1xi32>
    %4 = arith.remsi %0, %3 : vector<256x1xi32>
    %c0_i32_0 = arith.constant 0 : i32
    %5 = vector.broadcast %c0_i32_0 : i32 to vector<256x1xi32>
    %6 = arith.cmpi ne, %4, %5 : vector<256x1xi32>
    %c0_i32_1 = arith.constant 0 : i32
    %7 = vector.broadcast %c0_i32_1 : i32 to vector<256x1xi32>
    %8 = arith.cmpi slt, %4, %7 : vector<256x1xi32>
    %c0_i32_2 = arith.constant 0 : i32
    %9 = arith.cmpi slt, %2, %c0_i32_2 : i32
    %10 = vector.broadcast %9 : i1 to vector<256x1xi1>
    %11 = vector.broadcast %10 : vector<256x1xi1> to vector<256x1xi1>
    %12 = arith.xori %8, %11 : vector<256x1xi1>
    %13 = arith.andi %12, %6 : vector<256x1xi1>
    %14 = vector.broadcast %2 : i32 to vector<256x1xi32>
    %15 = arith.addi %4, %14 : vector<256x1xi32>
    %16 = arith.select %13, %15, %4 : vector<256x1xi1>, vector<256x1xi32>
    %c1_i32_3 = arith.constant 1 : i32
    %17 = vector.broadcast %c1_i32_3 : i32 to vector<256x1xi32>
    %18 = arith.cmpi sge, %16, %17 : vector<256x1xi32>
    %c14_i32 = arith.constant 14 : i32
    %19 = vector.broadcast %c14_i32 : i32 to vector<256x1xi32>
    %20 = arith.cmpi sle, %16, %19 : vector<256x1xi32>
    %c0 = arith.constant 0 : index
    %c0_4 = arith.constant 0 : index
    %21 = vector.load %arg2[%c0, %c0_4] : memref<9x128xf32, #tpu.memory_space<vmem>>, vector<1x128xf32>
    %22 = vector.shape_cast %21 : vector<1x128xf32> to vector<128xf32>
    %c1 = arith.constant 1 : index
    %c0_5 = arith.constant 0 : index
    %23 = vector.load %arg2[%c1, %c0_5] : memref<9x128xf32, #tpu.memory_space<vmem>>, vector<1x128xf32>
    %24 = vector.shape_cast %23 : vector<1x128xf32> to vector<128xf32>
    %c2 = arith.constant 2 : index
    %c0_6 = arith.constant 0 : index
    %25 = vector.load %arg2[%c2, %c0_6] : memref<9x128xf32, #tpu.memory_space<vmem>>, vector<1x128xf32>
    %26 = vector.shape_cast %25 : vector<1x128xf32> to vector<128xf32>
    %c3 = arith.constant 3 : index
    %c0_7 = arith.constant 0 : index
    %27 = vector.load %arg2[%c3, %c0_7] : memref<9x128xf32, #tpu.memory_space<vmem>>, vector<1x128xf32>
    %28 = vector.shape_cast %27 : vector<1x128xf32> to vector<128xf32>
    %c4 = arith.constant 4 : index
    %c0_8 = arith.constant 0 : index
    %29 = vector.load %arg2[%c4, %c0_8] : memref<9x128xf32, #tpu.memory_space<vmem>>, vector<1x128xf32>
    %30 = vector.shape_cast %29 : vector<1x128xf32> to vector<128xf32>
    %c5 = arith.constant 5 : index
    %c0_9 = arith.constant 0 : index
    %31 = vector.load %arg2[%c5, %c0_9] : memref<9x128xf32, #tpu.memory_space<vmem>>, vector<1x128xf32>
    %32 = vector.shape_cast %31 : vector<1x128xf32> to vector<128xf32>
    %c6 = arith.constant 6 : index
    %c0_10 = arith.constant 0 : index
    %33 = vector.load %arg2[%c6, %c0_10] : memref<9x128xf32, #tpu.memory_space<vmem>>, vector<1x128xf32>
    %34 = vector.shape_cast %33 : vector<1x128xf32> to vector<128xf32>
    %c7 = arith.constant 7 : index
    %c0_11 = arith.constant 0 : index
    %35 = vector.load %arg2[%c7, %c0_11] : memref<9x128xf32, #tpu.memory_space<vmem>>, vector<1x128xf32>
    %36 = vector.shape_cast %35 : vector<1x128xf32> to vector<128xf32>
    %c8 = arith.constant 8 : index
    %c0_12 = arith.constant 0 : index
    %37 = vector.load %arg2[%c8, %c0_12] : memref<9x128xf32, #tpu.memory_space<vmem>>, vector<1x128xf32>
    %38 = vector.shape_cast %37 : vector<1x128xf32> to vector<128xf32>
    %c0_13 = arith.constant 0 : index
    %c0_14 = arith.constant 0 : index
    %39 = vector.load %arg3[%c0_13, %c0_14] : memref<1x128xf32, #tpu.memory_space<vmem>>, vector<1x128xf32>
    %cst = arith.constant 0.000000e+00 : f32
    %40 = vector.broadcast %cst : f32 to vector<16x128xf32>
    %c0_15 = arith.constant 0 : index
    %c0_16 = arith.constant 0 : index
    %41 = vector.load %arg5[%c0_15, %c0_16] : memref<272x128xf32, #tpu.memory_space<vmem>>, vector<16x128xf32>
    tpu.vector_store %arg5[%c0_15, %c0_16], %40 {strides = array<i32>} : memref<272x128xf32, #tpu.memory_space<vmem>>, vector<16x128xf32>,
    %c256 = arith.constant 256 : index
    %c0_17 = arith.constant 0 : index
    %42 = vector.load %arg6[%c256, %c0_17] : memref<272x128xf32, #tpu.memory_space<vmem>>, vector<16x128xf32>
    tpu.vector_store %arg6[%c256, %c0_17], %40 {strides = array<i32>} : memref<272x128xf32, #tpu.memory_space<vmem>>, vector<16x128xf32>,
    %c0_18 = arith.constant 0 : index
    %c0_19 = arith.constant 0 : index
    %c0_20 = arith.constant 0 : index
    %43 = vector.load %arg1[%c0_18, %c0_19, %c0_20] : memref<1x256x128xf32, #tpu.memory_space<vmem>>, vector<1x256x128xf32>
    %44 = vector.shape_cast %43 : vector<1x256x128xf32> to vector<256x128xf32>
    %c1_i32_21 = arith.constant 1 : i32
    %45 = tpu.dynamic_rotate %44 by %c1_i32_21 dim 0 : vector<256x128xf32>, i32 -> vector<256x128xf32>
    %cst_22 = arith.constant 0.000000e+00 : f32
    %46 = vector.shape_cast %18 : vector<256x1xi1> to vector<256x1xi1>
    %47 = vector.broadcast %46 : vector<256x1xi1> to vector<256x128xi1>
    %48 = vector.broadcast %cst_22 : f32 to vector<256x128xf32>
    %49 = arith.select %47, %45, %48 : vector<256x128xi1>, vector<256x128xf32>
    %c255_i32 = arith.constant 255 : i32
    %50 = tpu.dynamic_rotate %44 by %c255_i32 dim 0 : vector<256x128xf32>, i32 -> vector<256x128xf32>
    %cst_23 = arith.constant 0.000000e+00 : f32
    %51 = vector.shape_cast %20 : vector<256x1xi1> to vector<256x1xi1>
    %52 = vector.broadcast %51 : vector<256x1xi1> to vector<256x128xi1>
    %53 = vector.broadcast %cst_23 : f32 to vector<256x128xf32>
    %54 = arith.select %52, %50, %53 : vector<256x128xi1>, vector<256x128xf32>
    %55 = vector.shape_cast %22 : vector<128xf32> to vector<1x128xf32>
    %56 = vector.broadcast %55 : vector<1x128xf32> to vector<256x128xf32>
    %57 = arith.mulf %49, %56 : vector<256x128xf32>
    %58 = vector.shape_cast %24 : vector<128xf32> to vector<1x128xf32>
    %59 = vector.broadcast %58 : vector<1x128xf32> to vector<256x128xf32>
    %60 = arith.mulf %44, %59 : vector<256x128xf32>
    %61 = arith.addf %57, %60 : vector<256x128xf32>
    %62 = vector.shape_cast %26 : vector<128xf32> to vector<1x128xf32>
    %63 = vector.broadcast %62 : vector<1x128xf32> to vector<256x128xf32>
    %64 = arith.mulf %54, %63 : vector<256x128xf32>
    %65 = arith.addf %61, %64 : vector<256x128xf32>
    %66 = vector.shape_cast %28 : vector<128xf32> to vector<1x128xf32>
    %67 = vector.broadcast %66 : vector<1x128xf32> to vector<256x128xf32>
    %68 = arith.mulf %49, %67 : vector<256x128xf32>
    %69 = vector.shape_cast %30 : vector<128xf32> to vector<1x128xf32>
    %70 = vector.broadcast %69 : vector<1x128xf32> to vector<256x128xf32>
    %71 = arith.mulf %44, %70 : vector<256x128xf32>
    %72 = arith.addf %68, %71 : vector<256x128xf32>
    %73 = vector.shape_cast %32 : vector<128xf32> to vector<1x128xf32>
    %74 = vector.broadcast %73 : vector<1x128xf32> to vector<256x128xf32>
    %75 = arith.mulf %54, %74 : vector<256x128xf32>
    %76 = arith.addf %72, %75 : vector<256x128xf32>
    %77 = vector.shape_cast %34 : vector<128xf32> to vector<1x128xf32>
    %78 = vector.broadcast %77 : vector<1x128xf32> to vector<256x128xf32>
    %79 = arith.mulf %49, %78 : vector<256x128xf32>
    %80 = vector.shape_cast %36 : vector<128xf32> to vector<1x128xf32>
    %81 = vector.broadcast %80 : vector<1x128xf32> to vector<256x128xf32>
    %82 = arith.mulf %44, %81 : vector<256x128xf32>
    %83 = arith.addf %79, %82 : vector<256x128xf32>
    %84 = vector.shape_cast %38 : vector<128xf32> to vector<1x128xf32>
    %85 = vector.broadcast %84 : vector<1x128xf32> to vector<256x128xf32>
    %86 = arith.mulf %54, %85 : vector<256x128xf32>
    %87 = arith.addf %83, %86 : vector<256x128xf32>
    %c16 = arith.constant 16 : index
    %c0_24 = arith.constant 0 : index
    %88 = vector.load %arg5[%c16, %c0_24] : memref<272x128xf32, #tpu.memory_space<vmem>>, vector<256x128xf32>
    tpu.vector_store %arg5[%c16, %c0_24], %65 {strides = array<i32>} : memref<272x128xf32, #tpu.memory_space<vmem>>, vector<256x128xf32>,
    %c0_25 = arith.constant 0 : index
    %c0_26 = arith.constant 0 : index
    %89 = vector.load %arg6[%c0_25, %c0_26] : memref<272x128xf32, #tpu.memory_space<vmem>>, vector<256x128xf32>
    tpu.vector_store %arg6[%c0_25, %c0_26], %87 {strides = array<i32>} : memref<272x128xf32, #tpu.memory_space<vmem>>, vector<256x128xf32>,
    %90 = vector.broadcast %39 : vector<1x128xf32> to vector<256x128xf32>
    %91 = arith.addf %76, %90 : vector<256x128xf32>
    %c0_27 = arith.constant 0 : index
    %c0_28 = arith.constant 0 : index
    %92 = vector.load %arg5[%c0_27, %c0_28] : memref<272x128xf32, #tpu.memory_space<vmem>>, vector<256x128xf32>
    %93 = arith.addf %91, %92 : vector<256x128xf32>
    %c16_29 = arith.constant 16 : index
    %c0_30 = arith.constant 0 : index
    %94 = vector.load %arg6[%c16_29, %c0_30] : memref<272x128xf32, #tpu.memory_space<vmem>>, vector<256x128xf32>
    %95 = arith.addf %93, %94 : vector<256x128xf32>
    %c0_31 = arith.constant 0 : index
    %c0_32 = arith.constant 0 : index
    %c0_33 = arith.constant 0 : index
    %96 = vector.load %arg4[%c0_31, %c0_32, %c0_33] : memref<1x256x128xf32, #tpu.memory_space<vmem>>, vector<1x256x128xf32>
    %97 = vector.shape_cast %96 : vector<1x256x128xf32> to vector<256x128xf32>
    %98 = vector.shape_cast %95 : vector<256x128xf32> to vector<1x256x128xf32>
    tpu.vector_store %arg4[%c0_31, %c0_32, %c0_33], %98 {strides = array<i32>} : memref<1x256x128xf32, #tpu.memory_space<vmem>>, vector<1x256x128xf32>,
    return
  }
  func.func @transform_0(%arg0: i32) -> (i32, i32, i32) {
    %c0_i32 = arith.constant 0 : i32
    %c0_i32_0 = arith.constant 0 : i32
    %c0_i32_1 = arith.constant 0 : i32
    return %arg0, %c0_i32, %c0_i32_0 : i32, i32, i32
  }
  func.func @transform_1(%arg0: i32) -> (i32, i32) {
    %c0_i32 = arith.constant 0 : i32
    %c0_i32_0 = arith.constant 0 : i32
    %c0_i32_1 = arith.constant 0 : i32
    return %c0_i32, %c0_i32_0 : i32, i32
  }
  func.func @transform_2(%arg0: i32) -> (i32, i32) {
    %c0_i32 = arith.constant 0 : i32
    %c0_i32_0 = arith.constant 0 : i32
    %c0_i32_1 = arith.constant 0 : i32
    return %c0_i32, %c0_i32_0 : i32, i32
  }
  func.func @transform_3(%arg0: i32) -> (i32, i32, i32) {
    %c0_i32 = arith.constant 0 : i32
    %c0_i32_0 = arith.constant 0 : i32
    %c0_i32_1 = arith.constant 0 : i32
    return %arg0, %c0_i32, %c0_i32_0 : i32, i32, i32
  }
}

</mosaic_0001>

<llo_original>
// kernel: tpu_custom_call.1
$region0: #{tpu_custom_call.1}
  #allocation0 [shape = 'u32[]', space=smem, size = 0x4, offset = 0x4, fixed_abs, tag = 'smem constant byte address 0x4 - core index']
  #allocation1 [shape = 'u32[72,128]{1,0:T(1,128)}', space=vmem, size = 0x9000, scoped, tag = 'internal scratch']
  #allocation2 [shape = 'f32[272,128]{1,0:T(8,128)}', space=vmem, size = 0x22000, scoped, tag = 'scratch operand']
  #allocation3 [shape = 'f32[272,128]{1,0:T(8,128)}', space=vmem, size = 0x22000, scoped, tag = 'scratch operand']
  %s0 = inlined_call_operand.hbm [shape: f32[2,256,128], index: 0, kind: input, shape index: {}]
  %s1 = inlined_call_operand.hbm [shape: f32[9,128], index: 1, kind: input, shape index: {}]
  %s2 = inlined_call_operand.vmem [shape: f32[1,128], index: 2, kind: input, shape index: {}]
  %s3 = inlined_call_operand.hbm [shape: f32[2,256,128], index: 3, kind: output, shape index: {}]
  %s4 = sld [smem:[#allocation0]]
  $region53: #{tpu_custom_call.1} parent=0
    _
  %s6 = ssub.s32 1, %s4
  %s7 = scalar_select 0, %s6, %s4
  $region1: #{tpu_custom_call.1} parent=0
    #allocation4 [shape = 'u8[262144]{0}', space=vmem, size = 0x40000, scoped, tag = 'input window, operand 0']
    #allocation5 [shape = 's32[2]{0}', space=sflag, size = 0x8, scoped, tag = 'scoped memory for tpu_custom_call.1']
    #allocation6 [shape = 's32[2]{0}', space=sflag, size = 0x8, scoped, tag = 'scoped memory for tpu_custom_call.1']
    #allocation7 [shape = 'u8[8192]{0}', space=vmem, size = 0x2000, scoped, tag = 'input window, operand 1, single buffered']
    #allocation8 [shape = 's32[1]{0}', space=sflag, size = 0x4, scoped, tag = 'scoped memory for tpu_custom_call.1']
    #allocation9 [shape = 'u8[262144]{0}', space=vmem, size = 0x40000, scoped, tag = 'output window, operand 0']
    %8 = vsyncpa [#allocation5], 0
    %s9 = scalar_lea.sflag [#allocation5], 1
    %10 = vsyncpa %s9, 0
    %11 = vsyncpa [#allocation8], 0
    %12 = vsyncpa [#allocation6], 0
    %s13 = scalar_lea.sflag [#allocation6], 1
    %14 = vsyncpa %s13, 0
    loop: start=0, step=1, limit=4
    $region2: #{tpu_custom_call.1} parent=1 // loop_pre_header
      _
    $region3: #{tpu_custom_call.1} parent=1 // loop_header
      %s16 = sphi 0, %s20
      %p17 = scmp.ge.s32.totalorder %s16, 4
      %s26 = sphi 0, %s28
      %s29 = sphi 0, %s26
      %s30 = sphi 0, %s29
      %s46 = sphi 0, %s30
      %s50 = sphi 0, %s50
      %s52 = sphi 0, %s50
      %s53 = sphi 0, %s52
      %s67 = sphi 0, %s53
      %s71 = sphi 0, %s71
      %s73 = sphi 0, %s71
      %s74 = sphi 0, %s73
      %s88 = sphi 0, %s74
      %s94 = sphi 0, %s96
      %s97 = sphi 0, %s94
      %s98 = sphi 0, %s97
      %s114 = sphi 0, %s98
    $region4: #{tpu_custom_call.1} parent=1 // loop_header_branch
      %19 = sbr.rel (%p17) target = $region8
    $region5: #{tpu_custom_call.1} parent=1 // loop_body
      %s21 = ssub.s32 %s16, 1
      %s22 = ssub.s32 %s16, 2
      %s23 = sadd.s32 %s16, 1
      %s24 = ssub.s32 %s16, %s23
      %p25 = scmp.eq.s32.totalorder %s24, 0
      %s27 = sadd.s32 %s26, 1
      %s28 = scalar_select %p25, %s26, %s27
      %p31 = pneg %p25
      %p32 = scmp.eq.s32.totalorder %s16, 1
      %p33 = por %p31, %p32
      %p34 = scmp.ne.s32.totalorder %s26, %s29
      %p35 = scmp.eq.s32.totalorder %s16, 0
      %p36 = por %p34, %p35
      %p37 = scmp.ne.s32.totalorder %s26, %s29
      %p38 = scmp.eq.s32.totalorder %s21, 1
      %p39 = por %p37, %p38
      %p40 = scmp.ne.s32.totalorder %s29, %s30
      %p41 = scmp.eq.s32.totalorder %s21, 0
      %p42 = por %p40, %p41
      %p43 = scmp.ne.s32.totalorder %s29, %s30
      %p44 = scmp.eq.s32.totalorder %s22, 1
      %p45 = por %p43, %p44
      %p47 = scmp.ne.s32.totalorder %s30, %s46
      %p48 = scmp.eq.s32.totalorder %s22, 0
      %p49 = por %p47, %p48
      %s51 = sadd.s32 %s50, 1
      %p54 = scmp.eq.s32.totalorder %s16, 1
      %p55 = scmp.ne.s32.totalorder %s50, %s52
      %p56 = scmp.eq.s32.totalorder %s16, 0
      %p57 = por %p55, %p56
      %p58 = scmp.ne.s32.totalorder %s50, %s52
      %p59 = scmp.eq.s32.totalorder %s21, 1
      %p60 = por %p58, %p59
      %p61 = scmp.ne.s32.totalorder %s52, %s53
      %p62 = scmp.eq.s32.totalorder %s21, 0
      %p63 = por %p61, %p62
      %p64 = scmp.ne.s32.totalorder %s52, %s53
      %p65 = scmp.eq.s32.totalorder %s22, 1
      %p66 = por %p64, %p65
      %p68 = scmp.ne.s32.totalorder %s53, %s67
      %p69 = scmp.eq.s32.totalorder %s22, 0
      %p70 = por %p68, %p69
      %s72 = sadd.s32 %s71, 1
      %p75 = scmp.eq.s32.totalorder %s16, 1
      %p76 = scmp.ne.s32.totalorder %s71, %s73
      %p77 = scmp.eq.s32.totalorder %s16, 0
      %p78 = por %p76, %p77
      %p79 = scmp.ne.s32.totalorder %s71, %s73
      %p80 = scmp.eq.s32.totalorder %s21, 1
      %p81 = por %p79, %p80
      %p82 = scmp.ne.s32.totalorder %s73, %s74
      %p83 = scmp.eq.s32.totalorder %s21, 0
      %p84 = por %p82, %p83
      %p85 = scmp.ne.s32.totalorder %s73, %s74
      %p86 = scmp.eq.s32.totalorder %s22, 1
      %p87 = por %p85, %p86
      %p89 = scmp.ne.s32.totalorder %s74, %s88
      %p90 = scmp.eq.s32.totalorder %s22, 0
      %p91 = por %p89, %p90
      %s92 = ssub.s32 %s16, %s23
      %p93 = scmp.eq.s32.totalorder %s92, 0
      %s95 = sadd.s32 %s94, 1
      %s96 = scalar_select %p93, %s94, %s95
      %p99 = pneg %p93
      %p100 = scmp.eq.s32.totalorder %s16, 1
      %p101 = por %p99, %p100
      %p102 = scmp.ne.s32.totalorder %s94, %s97
      %p103 = scmp.eq.s32.totalorder %s16, 0
      %p104 = por %p102, %p103
      %p105 = scmp.ne.s32.totalorder %s94, %s97
      %p106 = scmp.eq.s32.totalorder %s21, 1
      %p107 = por %p105, %p106
      %p108 = scmp.ne.s32.totalorder %s97, %s98
      %p109 = scmp.eq.s32.totalorder %s21, 0
      %p110 = por %p108, %p109
      %p111 = scmp.ne.s32.totalorder %s97, %s98
      %p112 = scmp.eq.s32.totalorder %s22, 1
      %p113 = por %p111, %p112
      %p115 = scmp.ne.s32.totalorder %s98, %s114
      %p116 = scmp.eq.s32.totalorder %s22, 0
      %p117 = por %p115, %p116
      %p118 = scmp.le.s32.totalorder 1, %s16
      %p119 = scmp.lt.s32.totalorder %s16, 3
      %p120 = pnand %p118, %p119
      %p121 = pneg %p120
      // Predicated region
      $region9: #{tpu_custom_call.1} parent=5 // pred_check
        _
      $region10: #{tpu_custom_call.1} parent=5 // pred_check_branch
        %123 = sbr.rel (%p120) target = $region12
      $region11: #{tpu_custom_call.1} parent=5 // pred_region
        %s124 = ssub.s32 %s16, 1
        // Predicated region
        $region13: #{tpu_custom_call.1} parent=11 // pred_check
          %p125 = pneg %p63
        $region14: #{tpu_custom_call.1} parent=11 // pred_check_branch
          %127 = sbr.rel (%p125) target = $region16
        $region15: #{tpu_custom_call.1} parent=11 // pred_region
          %129 = vsyncadd [#allocation8], 0
          %s130 = sshll.u32 %s1, 4
          %s131 = int_to_ptr.hbm [resolvable:$true] %s130
          %s132 = sshll.u32 [#allocation7], 4
          %s133 = int_to_ptr.vmem [resolvable:$true] %s132
          %138 = dma.hbm_to_vmem [thread:$0]  %s131, 256, %s133, [#allocation8], 128, 128, 8
        $region16: #{tpu_custom_call.1} parent=11 // pred_fallthru
          _
        // Predicated region
        $region17: #{tpu_custom_call.1} parent=11 // pred_check
          %p139 = pneg %p84
        $region18: #{tpu_custom_call.1} parent=11 // pred_check_branch
          %141 = sbr.rel (%p139) target = $region20
        $region19: #{tpu_custom_call.1} parent=11 // pred_region
          _
        $region20: #{tpu_custom_call.1} parent=11 // pred_fallthru
          _
      $region12: #{tpu_custom_call.1} parent=5 // pred_fallthru
        _
      %p142 = scmp.lt.s32.totalorder %s16, 2
      // Predicated region
      $region21: #{tpu_custom_call.1} parent=5 // pred_check
        %p143 = pneg %p142
      $region22: #{tpu_custom_call.1} parent=5 // pred_check_branch
        %145 = sbr.rel (%p143) target = $region24
      $region23: #{tpu_custom_call.1} parent=5 // pred_region
        // Predicated region
        $region25: #{tpu_custom_call.1} parent=23 // pred_check
          %p146 = pneg %p36
        $region26: #{tpu_custom_call.1} parent=23 // pred_check_branch
          %148 = sbr.rel (%p146) target = $region28
        $region27: #{tpu_custom_call.1} parent=23 // pred_region
          %s149 = sand.u32 %s26, 1
          %s150 = scalar_lea.sflag [#allocation5], %s149
          %s151 = sand.u32 %s26, 1
          %s152 = smul.addr %s151, 256
          %s153 = scalar_lea.vmem [#allocation4], %s152
          %155 = vsyncadd %s150, 0
          %s156 = smul.addr %s16, 32
          %s157 = smul.addr %s156, 8
          %s158 = scalar_lea.hbm %s0, %s157
          %s159 = sshll.u32 %s158, 4
          %s160 = int_to_ptr.hbm [resolvable:$true] %s159
          %s161 = sshll.u32 %s153, 4
          %s162 = int_to_ptr.vmem [resolvable:$true] %s161
          %167 = dma.hbm_to_vmem [thread:$0]  %s160, 4096, %s162, %s150, 128, 128, 8
        $region28: #{tpu_custom_call.1} parent=23 // pred_fallthru
          _
      $region24: #{tpu_custom_call.1} parent=5 // pred_fallthru
        _
      %p168 = scmp.le.s32.totalorder 1, %s16
      %p169 = scmp.lt.s32.totalorder %s16, 3
      %p170 = pnand %p168, %p169
      %p171 = pneg %p170
      // Predicated region
      $region29: #{tpu_custom_call.1} parent=5 // pred_check
        _
      $region30: #{tpu_custom_call.1} parent=5 // pred_check_branch
        %173 = sbr.rel (%p170) target = $region32
      $region31: #{tpu_custom_call.1} parent=5 // pred_region
        %s174 = ssub.s32 %s16, 1
        %s175 = sand.u32 %s29, 1
        %s176 = scalar_lea.sflag [#allocation5], %s175
        %s177 = sand.u32 %s29, 1
        %s178 = smul.addr %s177, 256
        %s179 = scalar_lea.vmem [#allocation4], %s178
        // Predicated region
        $region33: #{tpu_custom_call.1} parent=31 // pred_check
          %p180 = pneg %p42
        $region34: #{tpu_custom_call.1} parent=31 // pred_check_branch
          %182 = sbr.rel (%p180) target = $region36
        $region35: #{tpu_custom_call.1} parent=31 // pred_region
          %184 = dma.done %s176, 4096
        $region36: #{tpu_custom_call.1} parent=31 // pred_fallthru
          _
        // Predicated region
        $region37: #{tpu_custom_call.1} parent=31 // pred_check
          %p185 = pneg %p63
        $region38: #{tpu_custom_call.1} parent=31 // pred_check_branch
          %187 = sbr.rel (%p185) target = $region40
        $region39: #{tpu_custom_call.1} parent=31 // pred_region
          %189 = dma.done [#allocation8], 256
        $region40: #{tpu_custom_call.1} parent=31 // pred_fallthru
          _
        %s190 = sand.u32 %s29, 1
        %s191 = scalar_lea.sflag [#allocation5], %s190
        %s192 = sand.u32 %s29, 1
        %s193 = smul.addr %s192, 256
        %s194 = scalar_lea.vmem [#allocation4], %s193
        %p195 = pneg %p42
        %p196 = pneg %p39
        %p197 = pneg %p63
        %p198 = pneg %p60
        %p199 = pneg %p84
        %p200 = pneg %p81
        %p201 = pneg %p110
        %p202 = pneg %p107
        %s203 = sand.u32 %s97, 1
        %s204 = scalar_lea.sflag [#allocation6], %s203
        %s205 = sand.u32 %s97, 1
        %s206 = smul.addr %s205, 256
        %s207 = scalar_lea.vmem [#allocation9], %s206
        %v208 = vlaneseq
        %v209 = vshrl.u32 %v208, 7
        %v210 = vadd.s32 %v209, 8
        %v211 = vadd.s32 %v209, 16
        %v212 = vadd.s32 %v209, 24
        %v213 = vadd.s32 %v209, 32
        %v214 = vadd.s32 %v209, 40
        %v215 = vadd.s32 %v209, 48
        %v216 = vadd.s32 %v209, 56
        %v217 = vadd.s32 %v209, 64
        %v218 = vadd.s32 %v209, 72
        %v219 = vadd.s32 %v209, 80
        %v220 = vadd.s32 %v209, 88
        %v221 = vadd.s32 %v209, 96
        %v222 = vadd.s32 %v209, 104
        %v223 = vadd.s32 %v209, 112
        %v224 = vadd.s32 %v209, 120
        %v225 = vadd.s32 %v209, 128
        %v226 = vadd.s32 %v209, 136
        %v227 = vadd.s32 %v209, 144
        %v228 = vadd.s32 %v209, 152
        %v229 = vadd.s32 %v209, 160
        %v230 = vadd.s32 %v209, 168
        %v231 = vadd.s32 %v209, 176
        %v232 = vadd.s32 %v209, 184
        %v233 = vadd.s32 %v209, 192
        %v234 = vadd.s32 %v209, 200
        %v235 = vadd.s32 %v209, 208
        %v236 = vadd.s32 %v209, 216
        %v237 = vadd.s32 %v209, 224
        %v238 = vadd.s32 %v209, 232
        %v239 = vadd.s32 %v209, 240
        %v240 = vadd.s32 %v209, 248
        %vm241 = vcmp.lt.s32.totalorder %v209, 0
        %v242 = vsub.s32 0, %v209
        %v243 = vsel %vm241, %v242, %v209
        %v244 = vshrl.u32 %v243, 4
        %v245 = vand.u32 %v243, 15
        %v246 = vsub.s32 0, %v245
        %v247 = vsel %vm241, %v246, %v245
        %vm248 = vcmp.lt.s32.totalorder %v210, 0
        %v249 = vsub.s32 0, %v210
        %v250 = vsel %vm248, %v249, %v210
        %v251 = vshrl.u32 %v250, 4
        %v252 = vand.u32 %v250, 15
        %v253 = vsub.s32 0, %v252
        %v254 = vsel %vm248, %v253, %v252
        %vm255 = vcmp.lt.s32.totalorder %v211, 0
        %v256 = vsub.s32 0, %v211
        %v257 = vsel %vm255, %v256, %v211
        %v258 = vshrl.u32 %v257, 4
        %v259 = vand.u32 %v257, 15
        %v260 = vsub.s32 0, %v259
        %v261 = vsel %vm255, %v260, %v259
        %vm262 = vcmp.lt.s32.totalorder %v212, 0
        %v263 = vsub.s32 0, %v212
        %v264 = vsel %vm262, %v263, %v212
        %v265 = vshrl.u32 %v264, 4
        %v266 = vand.u32 %v264, 15
        %v267 = vsub.s32 0, %v266
        %v268 = vsel %vm262, %v267, %v266
        %vm269 = vcmp.lt.s32.totalorder %v213, 0
        %v270 = vsub.s32 0, %v213
        %v271 = vsel %vm269, %v270, %v213
        %v272 = vshrl.u32 %v271, 4
        %v273 = vand.u32 %v271, 15
        %v274 = vsub.s32 0, %v273
        %v275 = vsel %vm269, %v274, %v273
        %vm276 = vcmp.lt.s32.totalorder %v214, 0
        %v277 = vsub.s32 0, %v214
        %v278 = vsel %vm276, %v277, %v214
        %v279 = vshrl.u32 %v278, 4
        %v280 = vand.u32 %v278, 15
        %v281 = vsub.s32 0, %v280
        %v282 = vsel %vm276, %v281, %v280
        %vm283 = vcmp.lt.s32.totalorder %v215, 0
        %v284 = vsub.s32 0, %v215
        %v285 = vsel %vm283, %v284, %v215
        %v286 = vshrl.u32 %v285, 4
        %v287 = vand.u32 %v285, 15
        %v288 = vsub.s32 0, %v287
        %v289 = vsel %vm283, %v288, %v287
        %vm290 = vcmp.lt.s32.totalorder %v216, 0
        %v291 = vsub.s32 0, %v216
        %v292 = vsel %vm290, %v291, %v216
        %v293 = vshrl.u32 %v292, 4
        %v294 = vand.u32 %v292, 15
        %v295 = vsub.s32 0, %v294
        %v296 = vsel %vm290, %v295, %v294
        %vm297 = vcmp.lt.s32.totalorder %v217, 0
        %v298 = vsub.s32 0, %v217
        %v299 = vsel %vm297, %v298, %v217
        %v300 = vshrl.u32 %v299, 4
        %v301 = vand.u32 %v299, 15
        %v302 = vsub.s32 0, %v301
        %v303 = vsel %vm297, %v302, %v301
        %vm304 = vcmp.lt.s32.totalorder %v218, 0
        %v305 = vsub.s32 0, %v218
        %v306 = vsel %vm304, %v305, %v218
        %v307 = vshrl.u32 %v306, 4
        %v308 = vand.u32 %v306, 15
        %v309 = vsub.s32 0, %v308
        %v310 = vsel %vm304, %v309, %v308
        %vm311 = vcmp.lt.s32.totalorder %v219, 0
        %v312 = vsub.s32 0, %v219
        %v313 = vsel %vm311, %v312, %v219
        %v314 = vshrl.u32 %v313, 4
        %v315 = vand.u32 %v313, 15
        %v316 = vsub.s32 0, %v315
        %v317 = vsel %vm311, %v316, %v315
        %vm318 = vcmp.lt.s32.totalorder %v220, 0
        %v319 = vsub.s32 0, %v220
        %v320 = vsel %vm318, %v319, %v220
        %v321 = vshrl.u32 %v320, 4
        %v322 = vand.u32 %v320, 15
        %v323 = vsub.s32 0, %v322
        %v324 = vsel %vm318, %v323, %v322
        %vm325 = vcmp.lt.s32.totalorder %v221, 0
        %v326 = vsub.s32 0, %v221
        %v327 = vsel %vm325, %v326, %v221
        %v328 = vshrl.u32 %v327, 4
        %v329 = vand.u32 %v327, 15
        %v330 = vsub.s32 0, %v329
        %v331 = vsel %vm325, %v330, %v329
        %vm332 = vcmp.lt.s32.totalorder %v222, 0
        %v333 = vsub.s32 0, %v222
        %v334 = vsel %vm332, %v333, %v222
        %v335 = vshrl.u32 %v334, 4
        %v336 = vand.u32 %v334, 15
        %v337 = vsub.s32 0, %v336
        %v338 = vsel %vm332, %v337, %v336
        %vm339 = vcmp.lt.s32.totalorder %v223, 0
        %v340 = vsub.s32 0, %v223
        %v341 = vsel %vm339, %v340, %v223
        %v342 = vshrl.u32 %v341, 4
        %v343 = vand.u32 %v341, 15
        %v344 = vsub.s32 0, %v343
        %v345 = vsel %vm339, %v344, %v343
        %vm346 = vcmp.lt.s32.totalorder %v224, 0
        %v347 = vsub.s32 0, %v224
        %v348 = vsel %vm346, %v347, %v224
        %v349 = vshrl.u32 %v348, 4
        %v350 = vand.u32 %v348, 15
        %v351 = vsub.s32 0, %v350
        %v352 = vsel %vm346, %v351, %v350
        %vm353 = vcmp.lt.s32.totalorder %v225, 0
        %v354 = vsub.s32 0, %v225
        %v355 = vsel %vm353, %v354, %v225
        %v356 = vshrl.u32 %v355, 4
        %v357 = vand.u32 %v355, 15
        %v358 = vsub.s32 0, %v357
        %v359 = vsel %vm353, %v358, %v357
        %vm360 = vcmp.lt.s32.totalorder %v226, 0
        %v361 = vsub.s32 0, %v226
        %v362 = vsel %vm360, %v361, %v226
        %v363 = vshrl.u32 %v362, 4
        %v364 = vand.u32 %v362, 15
        %v365 = vsub.s32 0, %v364
        %v366 = vsel %vm360, %v365, %v364
        %vm367 = vcmp.lt.s32.totalorder %v227, 0
        %v368 = vsub.s32 0, %v227
        %v369 = vsel %vm367, %v368, %v227
        %v370 = vshrl.u32 %v369, 4
        %v371 = vand.u32 %v369, 15
        %v372 = vsub.s32 0, %v371
        %v373 = vsel %vm367, %v372, %v371
        %vm374 = vcmp.lt.s32.totalorder %v228, 0
        %v375 = vsub.s32 0, %v228
        %v376 = vsel %vm374, %v375, %v228
        %v377 = vshrl.u32 %v376, 4
        %v378 = vand.u32 %v376, 15
        %v379 = vsub.s32 0, %v378
        %v380 = vsel %vm374, %v379, %v378
        %vm381 = vcmp.lt.s32.totalorder %v229, 0
        %v382 = vsub.s32 0, %v229
        %v383 = vsel %vm381, %v382, %v229
        %v384 = vshrl.u32 %v383, 4
        %v385 = vand.u32 %v383, 15
        %v386 = vsub.s32 0, %v385
        %v387 = vsel %vm381, %v386, %v385
        %vm388 = vcmp.lt.s32.totalorder %v230, 0
        %v389 = vsub.s32 0, %v230
        %v390 = vsel %vm388, %v389, %v230
        %v391 = vshrl.u32 %v390, 4
        %v392 = vand.u32 %v390, 15
        %v393 = vsub.s32 0, %v392
        %v394 = vsel %vm388, %v393, %v392
        %vm395 = vcmp.lt.s32.totalorder %v231, 0
        %v396 = vsub.s32 0, %v231
        %v397 = vsel %vm395, %v396, %v231
        %v398 = vshrl.u32 %v397, 4
        %v399 = vand.u32 %v397, 15
        %v400 = vsub.s32 0, %v399
        %v401 = vsel %vm395, %v400, %v399
        %vm402 = vcmp.lt.s32.totalorder %v232, 0
        %v403 = vsub.s32 0, %v232
        %v404 = vsel %vm402, %v403, %v232
        %v405 = vshrl.u32 %v404, 4
        %v406 = vand.u32 %v404, 15
        %v407 = vsub.s32 0, %v406
        %v408 = vsel %vm402, %v407, %v406
        %vm409 = vcmp.lt.s32.totalorder %v233, 0
        %v410 = vsub.s32 0, %v233
        %v411 = vsel %vm409, %v410, %v233
        %v412 = vshrl.u32 %v411, 4
        %v413 = vand.u32 %v411, 15
        %v414 = vsub.s32 0, %v413
        %v415 = vsel %vm409, %v414, %v413
        %vm416 = vcmp.lt.s32.totalorder %v234, 0
        %v417 = vsub.s32 0, %v234
        %v418 = vsel %vm416, %v417, %v234
        %v419 = vshrl.u32 %v418, 4
        %v420 = vand.u32 %v418, 15
        %v421 = vsub.s32 0, %v420
        %v422 = vsel %vm416, %v421, %v420
        %vm423 = vcmp.lt.s32.totalorder %v235, 0
        %v424 = vsub.s32 0, %v235
        %v425 = vsel %vm423, %v424, %v235
        %v426 = vshrl.u32 %v425, 4
        %v427 = vand.u32 %v425, 15
        %v428 = vsub.s32 0, %v427
        %v429 = vsel %vm423, %v428, %v427
        %vm430 = vcmp.lt.s32.totalorder %v236, 0
        %v431 = vsub.s32 0, %v236
        %v432 = vsel %vm430, %v431, %v236
        %v433 = vshrl.u32 %v432, 4
        %v434 = vand.u32 %v432, 15
        %v435 = vsub.s32 0, %v434
        %v436 = vsel %vm430, %v435, %v434
        %vm437 = vcmp.lt.s32.totalorder %v237, 0
        %v438 = vsub.s32 0, %v237
        %v439 = vsel %vm437, %v438, %v237
        %v440 = vshrl.u32 %v439, 4
        %v441 = vand.u32 %v439, 15
        %v442 = vsub.s32 0, %v441
        %v443 = vsel %vm437, %v442, %v441
        %vm444 = vcmp.lt.s32.totalorder %v238, 0
        %v445 = vsub.s32 0, %v238
        %v446 = vsel %vm444, %v445, %v238
        %v447 = vshrl.u32 %v446, 4
        %v448 = vand.u32 %v446, 15
        %v449 = vsub.s32 0, %v448
        %v450 = vsel %vm444, %v449, %v448
        %vm451 = vcmp.lt.s32.totalorder %v239, 0
        %v452 = vsub.s32 0, %v239
        %v453 = vsel %vm451, %v452, %v239
        %v454 = vshrl.u32 %v453, 4
        %v455 = vand.u32 %v453, 15
        %v456 = vsub.s32 0, %v455
        %v457 = vsel %vm451, %v456, %v455
        %vm458 = vcmp.lt.s32.totalorder %v240, 0
        %v459 = vsub.s32 0, %v240
        %v460 = vsel %vm458, %v459, %v240
        %v461 = vshrl.u32 %v460, 4
        %v462 = vand.u32 %v460, 15
        %v463 = vsub.s32 0, %v462
        %v464 = vsel %vm458, %v463, %v462
        %vm465 = vcmp.ne.s32.totalorder %v247, 0
        %vm466 = vcmp.ne.s32.totalorder %v254, 0
        %vm467 = vcmp.ne.s32.totalorder %v261, 0
        %vm468 = vcmp.ne.s32.totalorder %v268, 0
        %vm469 = vcmp.ne.s32.totalorder %v275, 0
        %vm470 = vcmp.ne.s32.totalorder %v282, 0
        %vm471 = vcmp.ne.s32.totalorder %v289, 0
        %vm472 = vcmp.ne.s32.totalorder %v296, 0
        %vm473 = vcmp.ne.s32.totalorder %v303, 0
        %vm474 = vcmp.ne.s32.totalorder %v310, 0
        %vm475 = vcmp.ne.s32.totalorder %v317, 0
        %vm476 = vcmp.ne.s32.totalorder %v324, 0
        %vm477 = vcmp.ne.s32.totalorder %v331, 0
        %vm478 = vcmp.ne.s32.totalorder %v338, 0
        %vm479 = vcmp.ne.s32.totalorder %v345, 0
        %vm480 = vcmp.ne.s32.totalorder %v352, 0
        %vm481 = vcmp.ne.s32.totalorder %v359, 0
        %vm482 = vcmp.ne.s32.totalorder %v366, 0
        %vm483 = vcmp.ne.s32.totalorder %v373, 0
        %vm484 = vcmp.ne.s32.totalorder %v380, 0
        %vm485 = vcmp.ne.s32.totalorder %v387, 0
        %vm486 = vcmp.ne.s32.totalorder %v394, 0
        %vm487 = vcmp.ne.s32.totalorder %v401, 0
        %vm488 = vcmp.ne.s32.totalorder %v408, 0
        %vm489 = vcmp.ne.s32.totalorder %v415, 0
        %vm490 = vcmp.ne.s32.totalorder %v422, 0
        %vm491 = vcmp.ne.s32.totalorder %v429, 0
        %vm492 = vcmp.ne.s32.totalorder %v436, 0
        %vm493 = vcmp.ne.s32.totalorder %v443, 0
        %vm494 = vcmp.ne.s32.totalorder %v450, 0
        %vm495 = vcmp.ne.s32.totalorder %v457, 0
        %vm496 = vcmp.ne.s32.totalorder %v464, 0
        %vm497 = vcmp.lt.s32.totalorder %v247, 0
        %vm498 = vcmp.lt.s32.totalorder %v254, 0
        %vm499 = vcmp.lt.s32.totalorder %v261, 0
        %vm500 = vcmp.lt.s32.totalorder %v268, 0
        %vm501 = vcmp.lt.s32.totalorder %v275, 0
        %vm502 = vcmp.lt.s32.totalorder %v282, 0
        %vm503 = vcmp.lt.s32.totalorder %v289, 0
        %vm504 = vcmp.lt.s32.totalorder %v296, 0
        %vm505 = vcmp.lt.s32.totalorder %v303, 0
        %vm506 = vcmp.lt.s32.totalorder %v310, 0
        %vm507 = vcmp.lt.s32.totalorder %v317, 0
        %vm508 = vcmp.lt.s32.totalorder %v324, 0
        %vm509 = vcmp.lt.s32.totalorder %v331, 0
        %vm510 = vcmp.lt.s32.totalorder %v338, 0
        %vm511 = vcmp.lt.s32.totalorder %v345, 0
        %vm512 = vcmp.lt.s32.totalorder %v352, 0
        %vm513 = vcmp.lt.s32.totalorder %v359, 0
        %vm514 = vcmp.lt.s32.totalorder %v366, 0
        %vm515 = vcmp.lt.s32.totalorder %v373, 0
        %vm516 = vcmp.lt.s32.totalorder %v380, 0
        %vm517 = vcmp.lt.s32.totalorder %v387, 0
        %vm518 = vcmp.lt.s32.totalorder %v394, 0
        %vm519 = vcmp.lt.s32.totalorder %v401, 0
        %vm520 = vcmp.lt.s32.totalorder %v408, 0
        %vm521 = vcmp.lt.s32.totalorder %v415, 0
        %vm522 = vcmp.lt.s32.totalorder %v422, 0
        %vm523 = vcmp.lt.s32.totalorder %v429, 0
        %vm524 = vcmp.lt.s32.totalorder %v436, 0
        %vm525 = vcmp.lt.s32.totalorder %v443, 0
        %vm526 = vcmp.lt.s32.totalorder %v450, 0
        %vm527 = vcmp.lt.s32.totalorder %v457, 0
        %vm528 = vcmp.lt.s32.totalorder %v464, 0
        %vm529 = vmand %vm497, %vm465
        %vm530 = vmand %vm498, %vm466
        %vm531 = vmand %vm499, %vm467
        %vm532 = vmand %vm500, %vm468
        %vm533 = vmand %vm501, %vm469
        %vm534 = vmand %vm502, %vm470
        %vm535 = vmand %vm503, %vm471
        %vm536 = vmand %vm504, %vm472
        %vm537 = vmand %vm505, %vm473
        %vm538 = vmand %vm506, %vm474
        %vm539 = vmand %vm507, %vm475
        %vm540 = vmand %vm508, %vm476
        %vm541 = vmand %vm509, %vm477
        %vm542 = vmand %vm510, %vm478
        %vm543 = vmand %vm511, %vm479
        %vm544 = vmand %vm512, %vm480
        %vm545 = vmand %vm513, %vm481
        %vm546 = vmand %vm514, %vm482
        %vm547 = vmand %vm515, %vm483
        %vm548 = vmand %vm516, %vm484
        %vm549 = vmand %vm517, %vm485
        %vm550 = vmand %vm518, %vm486
        %vm551 = vmand %vm519, %vm487
        %vm552 = vmand %vm520, %vm488
        %vm553 = vmand %vm521, %vm489
        %vm554 = vmand %vm522, %vm490
        %vm555 = vmand %vm523, %vm491
        %vm556 = vmand %vm524, %vm492
        %vm557 = vmand %vm525, %vm493
        %vm558 = vmand %vm526, %vm494
        %vm559 = vmand %vm527, %vm495
        %vm560 = vmand %vm528, %vm496
        %v561 = vadd.s32 %v247, 16
        %v562 = vadd.s32 %v254, 16
        %v563 = vadd.s32 %v261, 16
        %v564 = vadd.s32 %v268, 16
        %v565 = vadd.s32 %v275, 16
        %v566 = vadd.s32 %v282, 16
        %v567 = vadd.s32 %v289, 16
        %v568 = vadd.s32 %v296, 16
        %v569 = vadd.s32 %v303, 16
        %v570 = vadd.s32 %v310, 16
        %v571 = vadd.s32 %v317, 16
        %v572 = vadd.s32 %v324, 16
        %v573 = vadd.s32 %v331, 16
        %v574 = vadd.s32 %v338, 16
        %v575 = vadd.s32 %v345, 16
        %v576 = vadd.s32 %v352, 16
        %v577 = vadd.s32 %v359, 16
        %v578 = vadd.s32 %v366, 16
        %v579 = vadd.s32 %v373, 16
        %v580 = vadd.s32 %v380, 16
        %v581 = vadd.s32 %v387, 16
        %v582 = vadd.s32 %v394, 16
        %v583 = vadd.s32 %v401, 16
        %v584 = vadd.s32 %v408, 16
        %v585 = vadd.s32 %v415, 16
        %v586 = vadd.s32 %v422, 16
        %v587 = vadd.s32 %v429, 16
        %v588 = vadd.s32 %v436, 16
        %v589 = vadd.s32 %v443, 16
        %v590 = vadd.s32 %v450, 16
        %v591 = vadd.s32 %v457, 16
        %v592 = vadd.s32 %v464, 16
        %v593 = vsel %vm529, %v561, %v247
        %v594 = vsel %vm530, %v562, %v254
        %v595 = vsel %vm531, %v563, %v261
        %v596 = vsel %vm532, %v564, %v268
        %v597 = vsel %vm533, %v565, %v275
        %v598 = vsel %vm534, %v566, %v282
        %v599 = vsel %vm535, %v567, %v289
        %v600 = vsel %vm536, %v568, %v296
        %v601 = vsel %vm537, %v569, %v303
        %v602 = vsel %vm538, %v570, %v310
        %v603 = vsel %vm539, %v571, %v317
        %v604 = vsel %vm540, %v572, %v324
        %v605 = vsel %vm541, %v573, %v331
        %v606 = vsel %vm542, %v574, %v338
        %v607 = vsel %vm543, %v575, %v345
        %v608 = vsel %vm544, %v576, %v352
        %v609 = vsel %vm545, %v577, %v359
        %v610 = vsel %vm546, %v578, %v366
        %v611 = vsel %vm547, %v579, %v373
        %v612 = vsel %vm548, %v580, %v380
        %v613 = vsel %vm549, %v581, %v387
        %v614 = vsel %vm550, %v582, %v394
        %v615 = vsel %vm551, %v583, %v401
        %v616 = vsel %vm552, %v584, %v408
        %v617 = vsel %vm553, %v585, %v415
        %v618 = vsel %vm554, %v586, %v422
        %v619 = vsel %vm555, %v587, %v429
        %v620 = vsel %vm556, %v588, %v436
        %v621 = vsel %vm557, %v589, %v443
        %v622 = vsel %vm558, %v590, %v450
        %v623 = vsel %vm559, %v591, %v457
        %v624 = vsel %vm560, %v592, %v464
        %vm625 = vcmp.ge.s32.totalorder %v593, 1
        %vm626 = vcmp.ge.s32.totalorder %v594, 1
        %vm627 = vcmp.ge.s32.totalorder %v595, 1
        %vm628 = vcmp.ge.s32.totalorder %v596, 1
        %vm629 = vcmp.ge.s32.totalorder %v597, 1
        %vm630 = vcmp.ge.s32.totalorder %v598, 1
        %vm631 = vcmp.ge.s32.totalorder %v599, 1
        %vm632 = vcmp.ge.s32.totalorder %v600, 1
        %vm633 = vcmp.ge.s32.totalorder %v601, 1
        %vm634 = vcmp.ge.s32.totalorder %v602, 1
        %vm635 = vcmp.ge.s32.totalorder %v603, 1
        %vm636 = vcmp.ge.s32.totalorder %v604, 1
        %vm637 = vcmp.ge.s32.totalorder %v605, 1
        %vm638 = vcmp.ge.s32.totalorder %v606, 1
        %vm639 = vcmp.ge.s32.totalorder %v607, 1
        %vm640 = vcmp.ge.s32.totalorder %v608, 1
        %vm641 = vcmp.ge.s32.totalorder %v609, 1
        %vm642 = vcmp.ge.s32.totalorder %v610, 1
        %vm643 = vcmp.ge.s32.totalorder %v611, 1
        %vm644 = vcmp.ge.s32.totalorder %v612, 1
        %vm645 = vcmp.ge.s32.totalorder %v613, 1
        %vm646 = vcmp.ge.s32.totalorder %v614, 1
        %vm647 = vcmp.ge.s32.totalorder %v615, 1
        %vm648 = vcmp.ge.s32.totalorder %v616, 1
        %vm649 = vcmp.ge.s32.totalorder %v617, 1
        %vm650 = vcmp.ge.s32.totalorder %v618, 1
        %vm651 = vcmp.ge.s32.totalorder %v619, 1
        %vm652 = vcmp.ge.s32.totalorder %v620, 1
        %vm653 = vcmp.ge.s32.totalorder %v621, 1
        %vm654 = vcmp.ge.s32.totalorder %v622, 1
        %vm655 = vcmp.ge.s32.totalorder %v623, 1
        %vm656 = vcmp.ge.s32.totalorder %v624, 1
        %vm657 = vcmp.le.s32.totalorder %v593, 14
        %vm658 = vcmp.le.s32.totalorder %v594, 14
        %vm659 = vcmp.le.s32.totalorder %v595, 14
        %vm660 = vcmp.le.s32.totalorder %v596, 14
        %vm661 = vcmp.le.s32.totalorder %v597, 14
        %vm662 = vcmp.le.s32.totalorder %v598, 14
        %vm663 = vcmp.le.s32.totalorder %v599, 14
        %vm664 = vcmp.le.s32.totalorder %v600, 14
        %vm665 = vcmp.le.s32.totalorder %v601, 14
        %vm666 = vcmp.le.s32.totalorder %v602, 14
        %vm667 = vcmp.le.s32.totalorder %v603, 14
        %vm668 = vcmp.le.s32.totalorder %v604, 14
        %vm669 = vcmp.le.s32.totalorder %v605, 14
        %vm670 = vcmp.le.s32.totalorder %v606, 14
        %vm671 = vcmp.le.s32.totalorder %v607, 14
        %vm672 = vcmp.le.s32.totalorder %v608, 14
        %vm673 = vcmp.le.s32.totalorder %v609, 14
        %vm674 = vcmp.le.s32.totalorder %v610, 14
        %vm675 = vcmp.le.s32.totalorder %v611, 14
        %vm676 = vcmp.le.s32.totalorder %v612, 14
        %vm677 = vcmp.le.s32.totalorder %v613, 14
        %vm678 = vcmp.le.s32.totalorder %v614, 14
        %vm679 = vcmp.le.s32.totalorder %v615, 14
        %vm680 = vcmp.le.s32.totalorder %v616, 14
        %vm681 = vcmp.le.s32.totalorder %v617, 14
        %vm682 = vcmp.le.s32.totalorder %v618, 14
        %vm683 = vcmp.le.s32.totalorder %v619, 14
        %vm684 = vcmp.le.s32.totalorder %v620, 14
        %vm685 = vcmp.le.s32.totalorder %v621, 14
        %vm686 = vcmp.le.s32.totalorder %v622, 14
        %vm687 = vcmp.le.s32.totalorder %v623, 14
        %vm688 = vcmp.le.s32.totalorder %v624, 14
        %v689 = vld [vmem:[#allocation7] sm:$0x1]
        %v690 = vld [vmem:[#allocation7 + $0x1] sm:$0x1]
        %v691 = vld [vmem:[#allocation7 + $0x2] sm:$0x1]
        %v692 = vld [vmem:[#allocation7 + $0x3] sm:$0x1]
        %v693 = vld [vmem:[#allocation7 + $0x4] sm:$0x1]
        %v694 = vld [vmem:[#allocation7 + $0x5] sm:$0x1]
        %v695 = vld [vmem:[#allocation7 + $0x6] sm:$0x1]
        %v696 = vld [vmem:[#allocation7 + $0x7] sm:$0x1]
        %v697 = vld [vmem:[#allocation7 + $0x8] sm:$0x1]
        %v698 = vld [vmem:[%s2] sm:$0x1]
        %699 = vst [vmem:[#allocation2] sm:$0xff] 0.0
        %700 = vst [vmem:[#allocation2 + $0x8] sm:$0xff] 0.0
        %701 = vst [vmem:[#allocation3 + $0x100] sm:$0xff] 0.0
        %702 = vst [vmem:[#allocation3 + $0x108] sm:$0xff] 0.0
        %v703 = vld [vmem:[%s179] sm:$0xff]
        %v704 = vld [vmem:[%s179 + $0x8] sm:$0xff]
        %v705 = vld [vmem:[%s179 + $0x10] sm:$0xff]
        %v706 = vld [vmem:[%s179 + $0x18] sm:$0xff]
        %v707 = vld [vmem:[%s179 + $0x20] sm:$0xff]
        %v708 = vld [vmem:[%s179 + $0x28] sm:$0xff]
        %v709 = vld [vmem:[%s179 + $0x30] sm:$0xff]
        %v710 = vld [vmem:[%s179 + $0x38] sm:$0xff]
        %v711 = vld [vmem:[%s179 + $0x40] sm:$0xff]
        %v712 = vld [vmem:[%s179 + $0x48] sm:$0xff]
        %v713 = vld [vmem:[%s179 + $0x50] sm:$0xff]
        %v714 = vld [vmem:[%s179 + $0x58] sm:$0xff]
        %v715 = vld [vmem:[%s179 + $0x60] sm:$0xff]
        %v716 = vld [vmem:[%s179 + $0x68] sm:$0xff]
        %v717 = vld [vmem:[%s179 + $0x70] sm:$0xff]
        %v718 = vld [vmem:[%s179 + $0x78] sm:$0xff]
        %v719 = vld [vmem:[%s179 + $0x80] sm:$0xff]
        %v720 = vld [vmem:[%s179 + $0x88] sm:$0xff]
        %v721 = vld [vmem:[%s179 + $0x90] sm:$0xff]
        %v722 = vld [vmem:[%s179 + $0x98] sm:$0xff]
        %v723 = vld [vmem:[%s179 + $0xa0] sm:$0xff]
        %v724 = vld [vmem:[%s179 + $0xa8] sm:$0xff]
        %v725 = vld [vmem:[%s179 + $0xb0] sm:$0xff]
        %v726 = vld [vmem:[%s179 + $0xb8] sm:$0xff]
        %v727 = vld [vmem:[%s179 + $0xc0] sm:$0xff]
        %v728 = vld [vmem:[%s179 + $0xc8] sm:$0xff]
        %v729 = vld [vmem:[%s179 + $0xd0] sm:$0xff]
        %v730 = vld [vmem:[%s179 + $0xd8] sm:$0xff]
        %v731 = vld [vmem:[%s179 + $0xe0] sm:$0xff]
        %v732 = vld [vmem:[%s179 + $0xe8] sm:$0xff]
        %v733 = vld [vmem:[%s179 + $0xf0] sm:$0xff]
        %v734 = vld [vmem:[%s179 + $0xf8] sm:$0xff]
        %v735 = vrot.slane %v703, 7
        %v736 = vrot.slane %v704, 7
        %v737 = vrot.slane %v705, 7
        %v738 = vrot.slane %v706, 7
        %v739 = vrot.slane %v707, 7
        %v740 = vrot.slane %v708, 7
        %v741 = vrot.slane %v709, 7
        %v742 = vrot.slane %v710, 7
        %v743 = vrot.slane %v711, 7
        %v744 = vrot.slane %v712, 7
        %v745 = vrot.slane %v713, 7
        %v746 = vrot.slane %v714, 7
        %v747 = vrot.slane %v715, 7
        %v748 = vrot.slane %v716, 7
        %v749 = vrot.slane %v717, 7
        %v750 = vrot.slane %v718, 7
        %v751 = vrot.slane %v719, 7
        %v752 = vrot.slane %v720, 7
        %v753 = vrot.slane %v721, 7
        %v754 = vrot.slane %v722, 7
        %v755 = vrot.slane %v723, 7
        %v756 = vrot.slane %v724, 7
        %v757 = vrot.slane %v725, 7
        %v758 = vrot.slane %v726, 7
        %v759 = vrot.slane %v727, 7
        %v760 = vrot.slane %v728, 7
        %v761 = vrot.slane %v729, 7
        %v762 = vrot.slane %v730, 7
        %v763 = vrot.slane %v731, 7
        %v764 = vrot.slane %v732, 7
        %v765 = vrot.slane %v733, 7
        %v766 = vrot.slane %v734, 7
        %vm767 = vcmp.lt.s32.totalorder %v209, 1
        %v768 = vsel %vm767, %v765, %v766
        %v769 = vsel %vm767, %v764, %v765
        %v770 = vsel %vm767, %v763, %v764
        %v771 = vsel %vm767, %v762, %v763
        %v772 = vsel %vm767, %v761, %v762
        %v773 = vsel %vm767, %v760, %v761
        %v774 = vsel %vm767, %v759, %v760
        %v775 = vsel %vm767, %v758, %v759
        %v776 = vsel %vm767, %v757, %v758
        %v777 = vsel %vm767, %v756, %v757
        %v778 = vsel %vm767, %v755, %v756
        %v779 = vsel %vm767, %v754, %v755
        %v780 = vsel %vm767, %v753, %v754
        %v781 = vsel %vm767, %v752, %v753
        %v782 = vsel %vm767, %v751, %v752
        %v783 = vsel %vm767, %v750, %v751
        %v784 = vsel %vm767, %v749, %v750
        %v785 = vsel %vm767, %v748, %v749
        %v786 = vsel %vm767, %v747, %v748
        %v787 = vsel %vm767, %v746, %v747
        %v788 = vsel %vm767, %v745, %v746
        %v789 = vsel %vm767, %v744, %v745
        %v790 = vsel %vm767, %v743, %v744
        %v791 = vsel %vm767, %v742, %v743
        %v792 = vsel %vm767, %v741, %v742
        %v793 = vsel %vm767, %v740, %v741
        %v794 = vsel %vm767, %v739, %v740
        %v795 = vsel %vm767, %v738, %v739
        %v796 = vsel %vm767, %v737, %v738
        %v797 = vsel %vm767, %v736, %v737
        %v798 = vsel %vm767, %v735, %v736
        %v799 = vsel %vm767, %v766, %v735
        %v800 = vsel %vm625, 1, 0
        %v801 = vsel %vm626, 1, 0
        %v802 = vsel %vm627, 1, 0
        %v803 = vsel %vm628, 1, 0
        %v804 = vsel %vm629, 1, 0
        %v805 = vsel %vm630, 1, 0
        %v806 = vsel %vm631, 1, 0
        %v807 = vsel %vm632, 1, 0
        %v808 = vsel %vm633, 1, 0
        %v809 = vsel %vm634, 1, 0
        %v810 = vsel %vm635, 1, 0
        %v811 = vsel %vm636, 1, 0
        %v812 = vsel %vm637, 1, 0
        %v813 = vsel %vm638, 1, 0
        %v814 = vsel %vm639, 1, 0
        %v815 = vsel %vm640, 1, 0
        %v816 = vsel %vm641, 1, 0
        %v817 = vsel %vm642, 1, 0
        %v818 = vsel %vm643, 1, 0
        %v819 = vsel %vm644, 1, 0
        %v820 = vsel %vm645, 1, 0
        %v821 = vsel %vm646, 1, 0
        %v822 = vsel %vm647, 1, 0
        %v823 = vsel %vm648, 1, 0
        %v824 = vsel %vm649, 1, 0
        %v825 = vsel %vm650, 1, 0
        %v826 = vsel %vm651, 1, 0
        %v827 = vsel %vm652, 1, 0
        %v828 = vsel %vm653, 1, 0
        %v829 = vsel %vm654, 1, 0
        %v830 = vsel %vm655, 1, 0
        %v831 = vsel %vm656, 1, 0
        %vm832 = vcmp.eq.s32.totalorder %v800, 1
        %vm833 = vcmp.eq.s32.totalorder %v801, 1
        %vm834 = vcmp.eq.s32.totalorder %v802, 1
        %vm835 = vcmp.eq.s32.totalorder %v803, 1
        %vm836 = vcmp.eq.s32.totalorder %v804, 1
        %vm837 = vcmp.eq.s32.totalorder %v805, 1
        %vm838 = vcmp.eq.s32.totalorder %v806, 1
        %vm839 = vcmp.eq.s32.totalorder %v807, 1
        %vm840 = vcmp.eq.s32.totalorder %v808, 1
        %vm841 = vcmp.eq.s32.totalorder %v809, 1
        %vm842 = vcmp.eq.s32.totalorder %v810, 1
        %vm843 = vcmp.eq.s32.totalorder %v811, 1
        %vm844 = vcmp.eq.s32.totalorder %v812, 1
        %vm845 = vcmp.eq.s32.totalorder %v813, 1
        %vm846 = vcmp.eq.s32.totalorder %v814, 1
        %vm847 = vcmp.eq.s32.totalorder %v815, 1
        %vm848 = vcmp.eq.s32.totalorder %v816, 1
        %vm849 = vcmp.eq.s32.totalorder %v817, 1
        %vm850 = vcmp.eq.s32.totalorder %v818, 1
        %vm851 = vcmp.eq.s32.totalorder %v819, 1
        %vm852 = vcmp.eq.s32.totalorder %v820, 1
        %vm853 = vcmp.eq.s32.totalorder %v821, 1
        %vm854 = vcmp.eq.s32.totalorder %v822, 1
        %vm855 = vcmp.eq.s32.totalorder %v823, 1
        %vm856 = vcmp.eq.s32.totalorder %v824, 1
        %vm857 = vcmp.eq.s32.totalorder %v825, 1
        %vm858 = vcmp.eq.s32.totalorder %v826, 1
        %vm859 = vcmp.eq.s32.totalorder %v827, 1
        %vm860 = vcmp.eq.s32.totalorder %v828, 1
        %vm861 = vcmp.eq.s32.totalorder %v829, 1
        %vm862 = vcmp.eq.s32.totalorder %v830, 1
        %vm863 = vcmp.eq.s32.totalorder %v831, 1
        %v864 = vsel %vm832, %v799, 0.0
        %v865 = vsel %vm833, %v798, 0.0
        %v866 = vsel %vm834, %v797, 0.0
        %v867 = vsel %vm835, %v796, 0.0
        %v868 = vsel %vm836, %v795, 0.0
        %v869 = vsel %vm837, %v794, 0.0
        %v870 = vsel %vm838, %v793, 0.0
        %v871 = vsel %vm839, %v792, 0.0
        %v872 = vsel %vm840, %v791, 0.0
        %v873 = vsel %vm841, %v790, 0.0
        %v874 = vsel %vm842, %v789, 0.0
        %v875 = vsel %vm843, %v788, 0.0
        %v876 = vsel %vm844, %v787, 0.0
        %v877 = vsel %vm845, %v786, 0.0
        %v878 = vsel %vm846, %v785, 0.0
        %v879 = vsel %vm847, %v784, 0.0
        %v880 = vsel %vm848, %v783, 0.0
        %v881 = vsel %vm849, %v782, 0.0
        %v882 = vsel %vm850, %v781, 0.0
        %v883 = vsel %vm851, %v780, 0.0
        %v884 = vsel %vm852, %v779, 0.0
        %v885 = vsel %vm853, %v778, 0.0
        %v886 = vsel %vm854, %v777, 0.0
        %v887 = vsel %vm855, %v776, 0.0
        %v888 = vsel %vm856, %v775, 0.0
        %v889 = vsel %vm857, %v774, 0.0
        %v890 = vsel %vm858, %v773, 0.0
        %v891 = vsel %vm859, %v772, 0.0
        %v892 = vsel %vm860, %v771, 0.0
        %v893 = vsel %vm861, %v770, 0.0
        %v894 = vsel %vm862, %v769, 0.0
        %v895 = vsel %vm863, %v768, 0.0
        %v896 = vrot.slane %v703, 1
        %v897 = vrot.slane %v704, 1
        %v898 = vrot.slane %v705, 1
        %v899 = vrot.slane %v706, 1
        %v900 = vrot.slane %v707, 1
        %v901 = vrot.slane %v708, 1
        %v902 = vrot.slane %v709, 1
        %v903 = vrot.slane %v710, 1
        %v904 = vrot.slane %v711, 1
        %v905 = vrot.slane %v712, 1
        %v906 = vrot.slane %v713, 1
        %v907 = vrot.slane %v714, 1
        %v908 = vrot.slane %v715, 1
        %v909 = vrot.slane %v716, 1
        %v910 = vrot.slane %v717, 1
        %v911 = vrot.slane %v718, 1
        %v912 = vrot.slane %v719, 1
        %v913 = vrot.slane %v720, 1
        %v914 = vrot.slane %v721, 1
        %v915 = vrot.slane %v722, 1
        %v916 = vrot.slane %v723, 1
        %v917 = vrot.slane %v724, 1
        %v918 = vrot.slane %v725, 1
        %v919 = vrot.slane %v726, 1
        %v920 = vrot.slane %v727, 1
        %v921 = vrot.slane %v728, 1
        %v922 = vrot.slane %v729, 1
        %v923 = vrot.slane %v730, 1
        %v924 = vrot.slane %v731, 1
        %v925 = vrot.slane %v732, 1
        %v926 = vrot.slane %v733, 1
        %v927 = vrot.slane %v734, 1
        %vm928 = vcmp.lt.s32.totalorder %v209, 7
        %v929 = vsel %vm928, %v926, %v927
        %v930 = vsel %vm928, %v925, %v926
        %v931 = vsel %vm928, %v924, %v925
        %v932 = vsel %vm928, %v923, %v924
        %v933 = vsel %vm928, %v922, %v923
        %v934 = vsel %vm928, %v921, %v922
        %v935 = vsel %vm928, %v920, %v921
        %v936 = vsel %vm928, %v919, %v920
        %v937 = vsel %vm928, %v918, %v919
        %v938 = vsel %vm928, %v917, %v918
        %v939 = vsel %vm928, %v916, %v917
        %v940 = vsel %vm928, %v915, %v916
        %v941 = vsel %vm928, %v914, %v915
        %v942 = vsel %vm928, %v913, %v914
        %v943 = vsel %vm928, %v912, %v913
        %v944 = vsel %vm928, %v911, %v912
        %v945 = vsel %vm928, %v910, %v911
        %v946 = vsel %vm928, %v909, %v910
        %v947 = vsel %vm928, %v908, %v909
        %v948 = vsel %vm928, %v907, %v908
        %v949 = vsel %vm928, %v906, %v907
        %v950 = vsel %vm928, %v905, %v906
        %v951 = vsel %vm928, %v904, %v905
        %v952 = vsel %vm928, %v903, %v904
        %v953 = vsel %vm928, %v902, %v903
        %v954 = vsel %vm928, %v901, %v902
        %v955 = vsel %vm928, %v900, %v901
        %v956 = vsel %vm928, %v899, %v900
        %v957 = vsel %vm928, %v898, %v899
        %v958 = vsel %vm928, %v897, %v898
        %v959 = vsel %vm928, %v896, %v897
        %v960 = vsel %vm928, %v927, %v896
        %v961 = vsel %vm657, 1, 0
        %v962 = vsel %vm658, 1, 0
        %v963 = vsel %vm659, 1, 0
        %v964 = vsel %vm660, 1, 0
        %v965 = vsel %vm661, 1, 0
        %v966 = vsel %vm662, 1, 0
        %v967 = vsel %vm663, 1, 0
        %v968 = vsel %vm664, 1, 0
        %v969 = vsel %vm665, 1, 0
        %v970 = vsel %vm666, 1, 0
        %v971 = vsel %vm667, 1, 0
        %v972 = vsel %vm668, 1, 0
        %v973 = vsel %vm669, 1, 0
        %v974 = vsel %vm670, 1, 0
        %v975 = vsel %vm671, 1, 0
        %v976 = vsel %vm672, 1, 0
        %v977 = vsel %vm673, 1, 0
        %v978 = vsel %vm674, 1, 0
        %v979 = vsel %vm675, 1, 0
        %v980 = vsel %vm676, 1, 0
        %v981 = vsel %vm677, 1, 0
        %v982 = vsel %vm678, 1, 0
        %v983 = vsel %vm679, 1, 0
        %v984 = vsel %vm680, 1, 0
        %v985 = vsel %vm681, 1, 0
        %v986 = vsel %vm682, 1, 0
        %v987 = vsel %vm683, 1, 0
        %v988 = vsel %vm684, 1, 0
        %v989 = vsel %vm685, 1, 0
        %v990 = vsel %vm686, 1, 0
        %v991 = vsel %vm687, 1, 0
        %v992 = vsel %vm688, 1, 0
        %vm993 = vcmp.eq.s32.totalorder %v961, 1
        %vm994 = vcmp.eq.s32.totalorder %v962, 1
        %vm995 = vcmp.eq.s32.totalorder %v963, 1
        %vm996 = vcmp.eq.s32.totalorder %v964, 1
        %vm997 = vcmp.eq.s32.totalorder %v965, 1
        %vm998 = vcmp.eq.s32.totalorder %v966, 1
        %vm999 = vcmp.eq.s32.totalorder %v967, 1
        %vm1000 = vcmp.eq.s32.totalorder %v968, 1
        %vm1001 = vcmp.eq.s32.totalorder %v969, 1
        %vm1002 = vcmp.eq.s32.totalorder %v970, 1
        %vm1003 = vcmp.eq.s32.totalorder %v971, 1
        %vm1004 = vcmp.eq.s32.totalorder %v972, 1
        %vm1005 = vcmp.eq.s32.totalorder %v973, 1
        %vm1006 = vcmp.eq.s32.totalorder %v974, 1
        %vm1007 = vcmp.eq.s32.totalorder %v975, 1
        %vm1008 = vcmp.eq.s32.totalorder %v976, 1
        %vm1009 = vcmp.eq.s32.totalorder %v977, 1
        %vm1010 = vcmp.eq.s32.totalorder %v978, 1
        %vm1011 = vcmp.eq.s32.totalorder %v979, 1
        %vm1012 = vcmp.eq.s32.totalorder %v980, 1
        %vm1013 = vcmp.eq.s32.totalorder %v981, 1
        %vm1014 = vcmp.eq.s32.totalorder %v982, 1
        %vm1015 = vcmp.eq.s32.totalorder %v983, 1
        %vm1016 = vcmp.eq.s32.totalorder %v984, 1
        %vm1017 = vcmp.eq.s32.totalorder %v985, 1
        %vm1018 = vcmp.eq.s32.totalorder %v986, 1
        %vm1019 = vcmp.eq.s32.totalorder %v987, 1
        %vm1020 = vcmp.eq.s32.totalorder %v988, 1
        %vm1021 = vcmp.eq.s32.totalorder %v989, 1
        %vm1022 = vcmp.eq.s32.totalorder %v990, 1
        %vm1023 = vcmp.eq.s32.totalorder %v991, 1
        %vm1024 = vcmp.eq.s32.totalorder %v992, 1
        %v1025 = vsel %vm993, %v959, 0.0
        %v1026 = vsel %vm994, %v958, 0.0
        %v1027 = vsel %vm995, %v957, 0.0
        %v1028 = vsel %vm996, %v956, 0.0
        %v1029 = vsel %vm997, %v955, 0.0
        %v1030 = vsel %vm998, %v954, 0.0
        %v1031 = vsel %vm999, %v953, 0.0
        %v1032 = vsel %vm1000, %v952, 0.0
        %v1033 = vsel %vm1001, %v951, 0.0
        %v1034 = vsel %vm1002, %v950, 0.0
        %v1035 = vsel %vm1003, %v949, 0.0
        %v1036 = vsel %vm1004, %v948, 0.0
        %v1037 = vsel %vm1005, %v947, 0.0
        %v1038 = vsel %vm1006, %v946, 0.0
        %v1039 = vsel %vm1007, %v945, 0.0
        %v1040 = vsel %vm1008, %v944, 0.0
        %v1041 = vsel %vm1009, %v943, 0.0
        %v1042 = vsel %vm1010, %v942, 0.0
        %v1043 = vsel %vm1011, %v941, 0.0
        %v1044 = vsel %vm1012, %v940, 0.0
        %v1045 = vsel %vm1013, %v939, 0.0
        %v1046 = vsel %vm1014, %v938, 0.0
        %v1047 = vsel %vm1015, %v937, 0.0
        %v1048 = vsel %vm1016, %v936, 0.0
        %v1049 = vsel %vm1017, %v935, 0.0
        %v1050 = vsel %vm1018, %v934, 0.0
        %v1051 = vsel %vm1019, %v933, 0.0
        %v1052 = vsel %vm1020, %v932, 0.0
        %v1053 = vsel %vm1021, %v931, 0.0
        %v1054 = vsel %vm1022, %v930, 0.0
        %v1055 = vsel %vm1023, %v929, 0.0
        %v1056 = vsel %vm1024, %v960, 0.0
        %v1057 = vperm.slane %v689, 0
        %v1058 = vmul.f32 %v864, %v1057
        %v1059 = vmul.f32 %v865, %v1057
        %v1060 = vmul.f32 %v866, %v1057
        %v1061 = vmul.f32 %v867, %v1057
        %v1062 = vmul.f32 %v868, %v1057
        %v1063 = vmul.f32 %v869, %v1057
        %v1064 = vmul.f32 %v870, %v1057
        %v1065 = vmul.f32 %v871, %v1057
        %v1066 = vmul.f32 %v872, %v1057
        %v1067 = vmul.f32 %v873, %v1057
        %v1068 = vmul.f32 %v874, %v1057
        %v1069 = vmul.f32 %v875, %v1057
        %v1070 = vmul.f32 %v876, %v1057
        %v1071 = vmul.f32 %v877, %v1057
        %v1072 = vmul.f32 %v878, %v1057
        %v1073 = vmul.f32 %v879, %v1057
        %v1074 = vmul.f32 %v880, %v1057
        %v1075 = vmul.f32 %v881, %v1057
        %v1076 = vmul.f32 %v882, %v1057
        %v1077 = vmul.f32 %v883, %v1057
        %v1078 = vmul.f32 %v884, %v1057
        %v1079 = vmul.f32 %v885, %v1057
        %v1080 = vmul.f32 %v886, %v1057
        %v1081 = vmul.f32 %v887, %v1057
        %v1082 = vmul.f32 %v888, %v1057
        %v1083 = vmul.f32 %v889, %v1057
        %v1084 = vmul.f32 %v890, %v1057
        %v1085 = vmul.f32 %v891, %v1057
        %v1086 = vmul.f32 %v892, %v1057
        %v1087 = vmul.f32 %v893, %v1057
        %v1088 = vmul.f32 %v894, %v1057
        %v1089 = vmul.f32 %v895, %v1057
        %v1090 = vperm.slane %v690, 0
        %v1091 = vmul.f32 %v703, %v1090
        %v1092 = vmul.f32 %v704, %v1090
        %v1093 = vmul.f32 %v705, %v1090
        %v1094 = vmul.f32 %v706, %v1090
        %v1095 = vmul.f32 %v707, %v1090
        %v1096 = vmul.f32 %v708, %v1090
        %v1097 = vmul.f32 %v709, %v1090
        %v1098 = vmul.f32 %v710, %v1090
        %v1099 = vmul.f32 %v711, %v1090
        %v1100 = vmul.f32 %v712, %v1090
        %v1101 = vmul.f32 %v713, %v1090
        %v1102 = vmul.f32 %v714, %v1090
        %v1103 = vmul.f32 %v715, %v1090
        %v1104 = vmul.f32 %v716, %v1090
        %v1105 = vmul.f32 %v717, %v1090
        %v1106 = vmul.f32 %v718, %v1090
        %v1107 = vmul.f32 %v719, %v1090
        %v1108 = vmul.f32 %v720, %v1090
        %v1109 = vmul.f32 %v721, %v1090
        %v1110 = vmul.f32 %v722, %v1090
        %v1111 = vmul.f32 %v723, %v1090
        %v1112 = vmul.f32 %v724, %v1090
        %v1113 = vmul.f32 %v725, %v1090
        %v1114 = vmul.f32 %v726, %v1090
        %v1115 = vmul.f32 %v727, %v1090
        %v1116 = vmul.f32 %v728, %v1090
        %v1117 = vmul.f32 %v729, %v1090
        %v1118 = vmul.f32 %v730, %v1090
        %v1119 = vmul.f32 %v731, %v1090
        %v1120 = vmul.f32 %v732, %v1090
        %v1121 = vmul.f32 %v733, %v1090
        %v1122 = vmul.f32 %v734, %v1090
        %v1123 = vadd.f32 %v1058, %v1091
        %v1124 = vadd.f32 %v1059, %v1092
        %v1125 = vadd.f32 %v1060, %v1093
        %v1126 = vadd.f32 %v1061, %v1094
        %v1127 = vadd.f32 %v1062, %v1095
        %v1128 = vadd.f32 %v1063, %v1096
        %v1129 = vadd.f32 %v1064, %v1097
        %v1130 = vadd.f32 %v1065, %v1098
        %v1131 = vadd.f32 %v1066, %v1099
        %v1132 = vadd.f32 %v1067, %v1100
        %v1133 = vadd.f32 %v1068, %v1101
        %v1134 = vadd.f32 %v1069, %v1102
        %v1135 = vadd.f32 %v1070, %v1103
        %v1136 = vadd.f32 %v1071, %v1104
        %v1137 = vadd.f32 %v1072, %v1105
        %v1138 = vadd.f32 %v1073, %v1106
        %v1139 = vadd.f32 %v1074, %v1107
        %v1140 = vadd.f32 %v1075, %v1108
        %v1141 = vadd.f32 %v1076, %v1109
        %v1142 = vadd.f32 %v1077, %v1110
        %v1143 = vadd.f32 %v1078, %v1111
        %v1144 = vadd.f32 %v1079, %v1112
        %v1145 = vadd.f32 %v1080, %v1113
        %v1146 = vadd.f32 %v1081, %v1114
        %v1147 = vadd.f32 %v1082, %v1115
        %v1148 = vadd.f32 %v1083, %v1116
        %v1149 = vadd.f32 %v1084, %v1117
        %v1150 = vadd.f32 %v1085, %v1118
        %v1151 = vadd.f32 %v1086, %v1119
        %v1152 = vadd.f32 %v1087, %v1120
        %v1153 = vadd.f32 %v1088, %v1121
        %v1154 = vadd.f32 %v1089, %v1122
        %v1155 = vperm.slane %v691, 0
        %v1156 = vmul.f32 %v1025, %v1155
        %v1157 = vmul.f32 %v1026, %v1155
        %v1158 = vmul.f32 %v1027, %v1155
        %v1159 = vmul.f32 %v1028, %v1155
        %v1160 = vmul.f32 %v1029, %v1155
        %v1161 = vmul.f32 %v1030, %v1155
        %v1162 = vmul.f32 %v1031, %v1155
        %v1163 = vmul.f32 %v1032, %v1155
        %v1164 = vmul.f32 %v1033, %v1155
        %v1165 = vmul.f32 %v1034, %v1155
        %v1166 = vmul.f32 %v1035, %v1155
        %v1167 = vmul.f32 %v1036, %v1155
        %v1168 = vmul.f32 %v1037, %v1155
        %v1169 = vmul.f32 %v1038, %v1155
        %v1170 = vmul.f32 %v1039, %v1155
        %v1171 = vmul.f32 %v1040, %v1155
        %v1172 = vmul.f32 %v1041, %v1155
        %v1173 = vmul.f32 %v1042, %v1155
        %v1174 = vmul.f32 %v1043, %v1155
        %v1175 = vmul.f32 %v1044, %v1155
        %v1176 = vmul.f32 %v1045, %v1155
        %v1177 = vmul.f32 %v1046, %v1155
        %v1178 = vmul.f32 %v1047, %v1155
        %v1179 = vmul.f32 %v1048, %v1155
        %v1180 = vmul.f32 %v1049, %v1155
        %v1181 = vmul.f32 %v1050, %v1155
        %v1182 = vmul.f32 %v1051, %v1155
        %v1183 = vmul.f32 %v1052, %v1155
        %v1184 = vmul.f32 %v1053, %v1155
        %v1185 = vmul.f32 %v1054, %v1155
        %v1186 = vmul.f32 %v1055, %v1155
        %v1187 = vmul.f32 %v1056, %v1155
        %v1188 = vadd.f32 %v1123, %v1156
        %v1189 = vadd.f32 %v1124, %v1157
        %v1190 = vadd.f32 %v1125, %v1158
        %v1191 = vadd.f32 %v1126, %v1159
        %v1192 = vadd.f32 %v1127, %v1160
        %v1193 = vadd.f32 %v1128, %v1161
        %v1194 = vadd.f32 %v1129, %v1162
        %v1195 = vadd.f32 %v1130, %v1163
        %v1196 = vadd.f32 %v1131, %v1164
        %v1197 = vadd.f32 %v1132, %v1165
        %v1198 = vadd.f32 %v1133, %v1166
        %v1199 = vadd.f32 %v1134, %v1167
        %v1200 = vadd.f32 %v1135, %v1168
        %v1201 = vadd.f32 %v1136, %v1169
        %v1202 = vadd.f32 %v1137, %v1170
        %v1203 = vadd.f32 %v1138, %v1171
        %v1204 = vadd.f32 %v1139, %v1172
        %v1205 = vadd.f32 %v1140, %v1173
        %v1206 = vadd.f32 %v1141, %v1174
        %v1207 = vadd.f32 %v1142, %v1175
        %v1208 = vadd.f32 %v1143, %v1176
        %v1209 = vadd.f32 %v1144, %v1177
        %v1210 = vadd.f32 %v1145, %v1178
        %v1211 = vadd.f32 %v1146, %v1179
        %v1212 = vadd.f32 %v1147, %v1180
        %v1213 = vadd.f32 %v1148, %v1181
        %v1214 = vadd.f32 %v1149, %v1182
        %v1215 = vadd.f32 %v1150, %v1183
        %v1216 = vadd.f32 %v1151, %v1184
        %v1217 = vadd.f32 %v1152, %v1185
        %v1218 = vadd.f32 %v1153, %v1186
        %v1219 = vadd.f32 %v1154, %v1187
        %v1220 = vperm.slane %v692, 0
        %v1221 = vmul.f32 %v864, %v1220
        %v1222 = vmul.f32 %v865, %v1220
        %v1223 = vmul.f32 %v866, %v1220
        %v1224 = vmul.f32 %v867, %v1220
        %v1225 = vmul.f32 %v868, %v1220
        %v1226 = vmul.f32 %v869, %v1220
        %v1227 = vmul.f32 %v870, %v1220
        %v1228 = vmul.f32 %v871, %v1220
        %v1229 = vmul.f32 %v872, %v1220
        %v1230 = vmul.f32 %v873, %v1220
        %v1231 = vmul.f32 %v874, %v1220
        %v1232 = vmul.f32 %v875, %v1220
        %v1233 = vmul.f32 %v876, %v1220
        %v1234 = vmul.f32 %v877, %v1220
        %v1235 = vmul.f32 %v878, %v1220
        %v1236 = vmul.f32 %v879, %v1220
        %v1237 = vmul.f32 %v880, %v1220
        %v1238 = vmul.f32 %v881, %v1220
        %v1239 = vmul.f32 %v882, %v1220
        %v1240 = vmul.f32 %v883, %v1220
        %v1241 = vmul.f32 %v884, %v1220
        %v1242 = vmul.f32 %v885, %v1220
        %v1243 = vmul.f32 %v886, %v1220
        %v1244 = vmul.f32 %v887, %v1220
        %v1245 = vmul.f32 %v888, %v1220
        %v1246 = vmul.f32 %v889, %v1220
        %v1247 = vmul.f32 %v890, %v1220
        %v1248 = vmul.f32 %v891, %v1220
        %v1249 = vmul.f32 %v892, %v1220
        %v1250 = vmul.f32 %v893, %v1220
        %v1251 = vmul.f32 %v894, %v1220
        %v1252 = vmul.f32 %v895, %v1220
        %v1253 = vperm.slane %v693, 0
        %v1254 = vmul.f32 %v703, %v1253
        %v1255 = vmul.f32 %v704, %v1253
        %v1256 = vmul.f32 %v705, %v1253
        %v1257 = vmul.f32 %v706, %v1253
        %v1258 = vmul.f32 %v707, %v1253
        %v1259 = vmul.f32 %v708, %v1253
        %v1260 = vmul.f32 %v709, %v1253
        %v1261 = vmul.f32 %v710, %v1253
        %v1262 = vmul.f32 %v711, %v1253
        %v1263 = vmul.f32 %v712, %v1253
        %v1264 = vmul.f32 %v713, %v1253
        %v1265 = vmul.f32 %v714, %v1253
        %v1266 = vmul.f32 %v715, %v1253
        %v1267 = vmul.f32 %v716, %v1253
        %v1268 = vmul.f32 %v717, %v1253
        %v1269 = vmul.f32 %v718, %v1253
        %v1270 = vmul.f32 %v719, %v1253
        %v1271 = vmul.f32 %v720, %v1253
        %v1272 = vmul.f32 %v721, %v1253
        %v1273 = vmul.f32 %v722, %v1253
        %v1274 = vmul.f32 %v723, %v1253
        %v1275 = vmul.f32 %v724, %v1253
        %v1276 = vmul.f32 %v725, %v1253
        %v1277 = vmul.f32 %v726, %v1253
        %v1278 = vmul.f32 %v727, %v1253
        %v1279 = vmul.f32 %v728, %v1253
        %v1280 = vmul.f32 %v729, %v1253
        %v1281 = vmul.f32 %v730, %v1253
        %v1282 = vmul.f32 %v731, %v1253
        %v1283 = vmul.f32 %v732, %v1253
        %v1284 = vmul.f32 %v733, %v1253
        %v1285 = vmul.f32 %v734, %v1253
        %v1286 = vadd.f32 %v1221, %v1254
        %v1287 = vadd.f32 %v1222, %v1255
        %v1288 = vadd.f32 %v1223, %v1256
        %v1289 = vadd.f32 %v1224, %v1257
        %v1290 = vadd.f32 %v1225, %v1258
        %v1291 = vadd.f32 %v1226, %v1259
        %v1292 = vadd.f32 %v1227, %v1260
        %v1293 = vadd.f32 %v1228, %v1261
        %v1294 = vadd.f32 %v1229, %v1262
        %v1295 = vadd.f32 %v1230, %v1263
        %v1296 = vadd.f32 %v1231, %v1264
        %v1297 = vadd.f32 %v1232, %v1265
        %v1298 = vadd.f32 %v1233, %v1266
        %v1299 = vadd.f32 %v1234, %v1267
        %v1300 = vadd.f32 %v1235, %v1268
        %v1301 = vadd.f32 %v1236, %v1269
        %v1302 = vadd.f32 %v1237, %v1270
        %v1303 = vadd.f32 %v1238, %v1271
        %v1304 = vadd.f32 %v1239, %v1272
        %v1305 = vadd.f32 %v1240, %v1273
        %v1306 = vadd.f32 %v1241, %v1274
        %v1307 = vadd.f32 %v1242, %v1275
        %v1308 = vadd.f32 %v1243, %v1276
        %v1309 = vadd.f32 %v1244, %v1277
        %v1310 = vadd.f32 %v1245, %v1278
        %v1311 = vadd.f32 %v1246, %v1279
        %v1312 = vadd.f32 %v1247, %v1280
        %v1313 = vadd.f32 %v1248, %v1281
        %v1314 = vadd.f32 %v1249, %v1282
        %v1315 = vadd.f32 %v1250, %v1283
        %v1316 = vadd.f32 %v1251, %v1284
        %v1317 = vadd.f32 %v1252, %v1285
        %v1318 = vperm.slane %v694, 0
        %v1319 = vmul.f32 %v1025, %v1318
        %v1320 = vmul.f32 %v1026, %v1318
        %v1321 = vmul.f32 %v1027, %v1318
        %v1322 = vmul.f32 %v1028, %v1318
        %v1323 = vmul.f32 %v1029, %v1318
        %v1324 = vmul.f32 %v1030, %v1318
        %v1325 = vmul.f32 %v1031, %v1318
        %v1326 = vmul.f32 %v1032, %v1318
        %v1327 = vmul.f32 %v1033, %v1318
        %v1328 = vmul.f32 %v1034, %v1318
        %v1329 = vmul.f32 %v1035, %v1318
        %v1330 = vmul.f32 %v1036, %v1318
        %v1331 = vmul.f32 %v1037, %v1318
        %v1332 = vmul.f32 %v1038, %v1318
        %v1333 = vmul.f32 %v1039, %v1318
        %v1334 = vmul.f32 %v1040, %v1318
        %v1335 = vmul.f32 %v1041, %v1318
        %v1336 = vmul.f32 %v1042, %v1318
        %v1337 = vmul.f32 %v1043, %v1318
        %v1338 = vmul.f32 %v1044, %v1318
        %v1339 = vmul.f32 %v1045, %v1318
        %v1340 = vmul.f32 %v1046, %v1318
        %v1341 = vmul.f32 %v1047, %v1318
        %v1342 = vmul.f32 %v1048, %v1318
        %v1343 = vmul.f32 %v1049, %v1318
        %v1344 = vmul.f32 %v1050, %v1318
        %v1345 = vmul.f32 %v1051, %v1318
        %v1346 = vmul.f32 %v1052, %v1318
        %v1347 = vmul.f32 %v1053, %v1318
        %v1348 = vmul.f32 %v1054, %v1318
        %v1349 = vmul.f32 %v1055, %v1318
        %v1350 = vmul.f32 %v1056, %v1318
        %v1351 = vadd.f32 %v1286, %v1319
        %v1352 = vadd.f32 %v1287, %v1320
        %v1353 = vadd.f32 %v1288, %v1321
        %v1354 = vadd.f32 %v1289, %v1322
        %v1355 = vadd.f32 %v1290, %v1323
        %v1356 = vadd.f32 %v1291, %v1324
        %v1357 = vadd.f32 %v1292, %v1325
        %v1358 = vadd.f32 %v1293, %v1326
        %v1359 = vadd.f32 %v1294, %v1327
        %v1360 = vadd.f32 %v1295, %v1328
        %v1361 = vadd.f32 %v1296, %v1329
        %v1362 = vadd.f32 %v1297, %v1330
        %v1363 = vadd.f32 %v1298, %v1331
        %v1364 = vadd.f32 %v1299, %v1332
        %v1365 = vadd.f32 %v1300, %v1333
        %v1366 = vadd.f32 %v1301, %v1334
        %v1367 = vadd.f32 %v1302, %v1335
        %v1368 = vadd.f32 %v1303, %v1336
        %v1369 = vadd.f32 %v1304, %v1337
        %v1370 = vadd.f32 %v1305, %v1338
        %v1371 = vadd.f32 %v1306, %v1339
        %v1372 = vadd.f32 %v1307, %v1340
        %v1373 = vadd.f32 %v1308, %v1341
        %v1374 = vadd.f32 %v1309, %v1342
        %v1375 = vadd.f32 %v1310, %v1343
        %v1376 = vadd.f32 %v1311, %v1344
        %v1377 = vadd.f32 %v1312, %v1345
        %v1378 = vadd.f32 %v1313, %v1346
        %v1379 = vadd.f32 %v1314, %v1347
        %v1380 = vadd.f32 %v1315, %v1348
        %v1381 = vadd.f32 %v1316, %v1349
        %v1382 = vadd.f32 %v1317, %v1350
        %v1383 = vperm.slane %v695, 0
        %v1384 = vmul.f32 %v864, %v1383
        %v1385 = vmul.f32 %v865, %v1383
        %v1386 = vmul.f32 %v866, %v1383
        %v1387 = vmul.f32 %v867, %v1383
        %v1388 = vmul.f32 %v868, %v1383
        %v1389 = vmul.f32 %v869, %v1383
        %v1390 = vmul.f32 %v870, %v1383
        %v1391 = vmul.f32 %v871, %v1383
        %v1392 = vmul.f32 %v872, %v1383
        %v1393 = vmul.f32 %v873, %v1383
        %v1394 = vmul.f32 %v874, %v1383
        %v1395 = vmul.f32 %v875, %v1383
        %v1396 = vmul.f32 %v876, %v1383
        %v1397 = vmul.f32 %v877, %v1383
        %v1398 = vmul.f32 %v878, %v1383
        %v1399 = vmul.f32 %v879, %v1383
        %v1400 = vmul.f32 %v880, %v1383
        %v1401 = vmul.f32 %v881, %v1383
        %v1402 = vmul.f32 %v882, %v1383
        %v1403 = vmul.f32 %v883, %v1383
        %v1404 = vmul.f32 %v884, %v1383
        %v1405 = vmul.f32 %v885, %v1383
        %v1406 = vmul.f32 %v886, %v1383
        %v1407 = vmul.f32 %v887, %v1383
        %v1408 = vmul.f32 %v888, %v1383
        %v1409 = vmul.f32 %v889, %v1383
        %v1410 = vmul.f32 %v890, %v1383
        %v1411 = vmul.f32 %v891, %v1383
        %v1412 = vmul.f32 %v892, %v1383
        %v1413 = vmul.f32 %v893, %v1383
        %v1414 = vmul.f32 %v894, %v1383
        %v1415 = vmul.f32 %v895, %v1383
        %v1416 = vperm.slane %v696, 0
        %v1417 = vmul.f32 %v703, %v1416
        %v1418 = vmul.f32 %v704, %v1416
        %v1419 = vmul.f32 %v705, %v1416
        %v1420 = vmul.f32 %v706, %v1416
        %v1421 = vmul.f32 %v707, %v1416
        %v1422 = vmul.f32 %v708, %v1416
        %v1423 = vmul.f32 %v709, %v1416
        %v1424 = vmul.f32 %v710, %v1416
        %v1425 = vmul.f32 %v711, %v1416
        %v1426 = vmul.f32 %v712, %v1416
        %v1427 = vmul.f32 %v713, %v1416
        %v1428 = vmul.f32 %v714, %v1416
        %v1429 = vmul.f32 %v715, %v1416
        %v1430 = vmul.f32 %v716, %v1416
        %v1431 = vmul.f32 %v717, %v1416
        %v1432 = vmul.f32 %v718, %v1416
        %v1433 = vmul.f32 %v719, %v1416
        %v1434 = vmul.f32 %v720, %v1416
        %v1435 = vmul.f32 %v721, %v1416
        %v1436 = vmul.f32 %v722, %v1416
        %v1437 = vmul.f32 %v723, %v1416
        %v1438 = vmul.f32 %v724, %v1416
        %v1439 = vmul.f32 %v725, %v1416
        %v1440 = vmul.f32 %v726, %v1416
        %v1441 = vmul.f32 %v727, %v1416
        %v1442 = vmul.f32 %v728, %v1416
        %v1443 = vmul.f32 %v729, %v1416
        %v1444 = vmul.f32 %v730, %v1416
        %v1445 = vmul.f32 %v731, %v1416
        %v1446 = vmul.f32 %v732, %v1416
        %v1447 = vmul.f32 %v733, %v1416
        %v1448 = vmul.f32 %v734, %v1416
        %v1449 = vadd.f32 %v1384, %v1417
        %v1450 = vadd.f32 %v1385, %v1418
        %v1451 = vadd.f32 %v1386, %v1419
        %v1452 = vadd.f32 %v1387, %v1420
        %v1453 = vadd.f32 %v1388, %v1421
        %v1454 = vadd.f32 %v1389, %v1422
        %v1455 = vadd.f32 %v1390, %v1423
        %v1456 = vadd.f32 %v1391, %v1424
        %v1457 = vadd.f32 %v1392, %v1425
        %v1458 = vadd.f32 %v1393, %v1426
        %v1459 = vadd.f32 %v1394, %v1427
        %v1460 = vadd.f32 %v1395, %v1428
        %v1461 = vadd.f32 %v1396, %v1429
        %v1462 = vadd.f32 %v1397, %v1430
        %v1463 = vadd.f32 %v1398, %v1431
        %v1464 = vadd.f32 %v1399, %v1432
        %v1465 = vadd.f32 %v1400, %v1433
        %v1466 = vadd.f32 %v1401, %v1434
        %v1467 = vadd.f32 %v1402, %v1435
        %v1468 = vadd.f32 %v1403, %v1436
        %v1469 = vadd.f32 %v1404, %v1437
        %v1470 = vadd.f32 %v1405, %v1438
        %v1471 = vadd.f32 %v1406, %v1439
        %v1472 = vadd.f32 %v1407, %v1440
        %v1473 = vadd.f32 %v1408, %v1441
        %v1474 = vadd.f32 %v1409, %v1442
        %v1475 = vadd.f32 %v1410, %v1443
        %v1476 = vadd.f32 %v1411, %v1444
        %v1477 = vadd.f32 %v1412, %v1445
        %v1478 = vadd.f32 %v1413, %v1446
        %v1479 = vadd.f32 %v1414, %v1447
        %v1480 = vadd.f32 %v1415, %v1448
        %v1481 = vperm.slane %v697, 0
        %v1482 = vmul.f32 %v1025, %v1481
        %v1483 = vmul.f32 %v1026, %v1481
        %v1484 = vmul.f32 %v1027, %v1481
        %v1485 = vmul.f32 %v1028, %v1481
        %v1486 = vmul.f32 %v1029, %v1481
        %v1487 = vmul.f32 %v1030, %v1481
        %v1488 = vmul.f32 %v1031, %v1481
        %v1489 = vmul.f32 %v1032, %v1481
        %v1490 = vmul.f32 %v1033, %v1481
        %v1491 = vmul.f32 %v1034, %v1481
        %v1492 = vmul.f32 %v1035, %v1481
        %v1493 = vmul.f32 %v1036, %v1481
        %v1494 = vmul.f32 %v1037, %v1481
        %v1495 = vmul.f32 %v1038, %v1481
        %v1496 = vmul.f32 %v1039, %v1481
        %v1497 = vmul.f32 %v1040, %v1481
        %v1498 = vmul.f32 %v1041, %v1481
        %v1499 = vmul.f32 %v1042, %v1481
        %v1500 = vmul.f32 %v1043, %v1481
        %v1501 = vmul.f32 %v1044, %v1481
        %v1502 = vmul.f32 %v1045, %v1481
        %v1503 = vmul.f32 %v1046, %v1481
        %v1504 = vmul.f32 %v1047, %v1481
        %v1505 = vmul.f32 %v1048, %v1481
        %v1506 = vmul.f32 %v1049, %v1481
        %v1507 = vmul.f32 %v1050, %v1481
        %v1508 = vmul.f32 %v1051, %v1481
        %v1509 = vmul.f32 %v1052, %v1481
        %v1510 = vmul.f32 %v1053, %v1481
        %v1511 = vmul.f32 %v1054, %v1481
        %v1512 = vmul.f32 %v1055, %v1481
        %v1513 = vmul.f32 %v1056, %v1481
        %v1514 = vadd.f32 %v1449, %v1482
        %v1515 = vadd.f32 %v1450, %v1483
        %v1516 = vadd.f32 %v1451, %v1484
        %v1517 = vadd.f32 %v1452, %v1485
        %v1518 = vadd.f32 %v1453, %v1486
        %v1519 = vadd.f32 %v1454, %v1487
        %v1520 = vadd.f32 %v1455, %v1488
        %v1521 = vadd.f32 %v1456, %v1489
        %v1522 = vadd.f32 %v1457, %v1490
        %v1523 = vadd.f32 %v1458, %v1491
        %v1524 = vadd.f32 %v1459, %v1492
        %v1525 = vadd.f32 %v1460, %v1493
        %v1526 = vadd.f32 %v1461, %v1494
        %v1527 = vadd.f32 %v1462, %v1495
        %v1528 = vadd.f32 %v1463, %v1496
        %v1529 = vadd.f32 %v1464, %v1497
        %v1530 = vadd.f32 %v1465, %v1498
        %v1531 = vadd.f32 %v1466, %v1499
        %v1532 = vadd.f32 %v1467, %v1500
        %v1533 = vadd.f32 %v1468, %v1501
        %v1534 = vadd.f32 %v1469, %v1502
        %v1535 = vadd.f32 %v1470, %v1503
        %v1536 = vadd.f32 %v1471, %v1504
        %v1537 = vadd.f32 %v1472, %v1505
        %v1538 = vadd.f32 %v1473, %v1506
        %v1539 = vadd.f32 %v1474, %v1507
        %v1540 = vadd.f32 %v1475, %v1508
        %v1541 = vadd.f32 %v1476, %v1509
        %v1542 = vadd.f32 %v1477, %v1510
        %v1543 = vadd.f32 %v1478, %v1511
        %v1544 = vadd.f32 %v1479, %v1512
        %v1545 = vadd.f32 %v1480, %v1513
        %1546 = vst [vmem:[#allocation2 + $0x10] sm:$0xff] %v1188
        %1547 = vst [vmem:[#allocation2 + $0x18] sm:$0xff] %v1189
        %1548 = vst [vmem:[#allocation2 + $0x20] sm:$0xff] %v1190
        %1549 = vst [vmem:[#allocation2 + $0x28] sm:$0xff] %v1191
        %1550 = vst [vmem:[#allocation2 + $0x30] sm:$0xff] %v1192
        %1551 = vst [vmem:[#allocation2 + $0x38] sm:$0xff] %v1193
        %1552 = vst [vmem:[#allocation2 + $0x40] sm:$0xff] %v1194
        %1553 = vst [vmem:[#allocation2 + $0x48] sm:$0xff] %v1195
        %1554 = vst [vmem:[#allocation2 + $0x50] sm:$0xff] %v1196
        %1555 = vst [vmem:[#allocation2 + $0x58] sm:$0xff] %v1197
        %1556 = vst [vmem:[#allocation2 + $0x60] sm:$0xff] %v1198
        %1557 = vst [vmem:[#allocation2 + $0x68] sm:$0xff] %v1199
        %1558 = vst [vmem:[#allocation2 + $0x70] sm:$0xff] %v1200
        %1559 = vst [vmem:[#allocation2 + $0x78] sm:$0xff] %v1201
        %1560 = vst [vmem:[#allocation2 + $0x80] sm:$0xff] %v1202
        %1561 = vst [vmem:[#allocation2 + $0x88] sm:$0xff] %v1203
        %1562 = vst [vmem:[#allocation2 + $0x90] sm:$0xff] %v1204
        %1563 = vst [vmem:[#allocation2 + $0x98] sm:$0xff] %v1205
        %1564 = vst [vmem:[#allocation2 + $0xa0] sm:$0xff] %v1206
        %1565 = vst [vmem:[#allocation2 + $0xa8] sm:$0xff] %v1207
        %1566 = vst [vmem:[#allocation2 + $0xb0] sm:$0xff] %v1208
        %1567 = vst [vmem:[#allocation2 + $0xb8] sm:$0xff] %v1209
        %1568 = vst [vmem:[#allocation2 + $0xc0] sm:$0xff] %v1210
        %1569 = vst [vmem:[#allocation2 + $0xc8] sm:$0xff] %v1211
        %1570 = vst [vmem:[#allocation2 + $0xd0] sm:$0xff] %v1212
        %1571 = vst [vmem:[#allocation2 + $0xd8] sm:$0xff] %v1213
        %1572 = vst [vmem:[#allocation2 + $0xe0] sm:$0xff] %v1214
        %1573 = vst [vmem:[#allocation2 + $0xe8] sm:$0xff] %v1215
        %1574 = vst [vmem:[#allocation2 + $0xf0] sm:$0xff] %v1216
        %1575 = vst [vmem:[#allocation2 + $0xf8] sm:$0xff] %v1217
        %1576 = vst [vmem:[#allocation2 + $0x100] sm:$0xff] %v1218
        %1577 = vst [vmem:[#allocation2 + $0x108] sm:$0xff] %v1219
        %1578 = vst [vmem:[#allocation3] sm:$0xff] %v1514
        %1579 = vst [vmem:[#allocation3 + $0x8] sm:$0xff] %v1515
        %1580 = vst [vmem:[#allocation3 + $0x10] sm:$0xff] %v1516
        %1581 = vst [vmem:[#allocation3 + $0x18] sm:$0xff] %v1517
        %1582 = vst [vmem:[#allocation3 + $0x20] sm:$0xff] %v1518
        %1583 = vst [vmem:[#allocation3 + $0x28] sm:$0xff] %v1519
        %1584 = vst [vmem:[#allocation3 + $0x30] sm:$0xff] %v1520
        %1585 = vst [vmem:[#allocation3 + $0x38] sm:$0xff] %v1521
        %1586 = vst [vmem:[#allocation3 + $0x40] sm:$0xff] %v1522
        %1587 = vst [vmem:[#allocation3 + $0x48] sm:$0xff] %v1523
        %1588 = vst [vmem:[#allocation3 + $0x50] sm:$0xff] %v1524
        %1589 = vst [vmem:[#allocation3 + $0x58] sm:$0xff] %v1525
        %1590 = vst [vmem:[#allocation3 + $0x60] sm:$0xff] %v1526
        %1591 = vst [vmem:[#allocation3 + $0x68] sm:$0xff] %v1527
        %1592 = vst [vmem:[#allocation3 + $0x70] sm:$0xff] %v1528
        %1593 = vst [vmem:[#allocation3 + $0x78] sm:$0xff] %v1529
        %1594 = vst [vmem:[#allocation3 + $0x80] sm:$0xff] %v1530
        %1595 = vst [vmem:[#allocation3 + $0x88] sm:$0xff] %v1531
        %1596 = vst [vmem:[#allocation3 + $0x90] sm:$0xff] %v1532
        %1597 = vst [vmem:[#allocation3 + $0x98] sm:$0xff] %v1533
        %1598 = vst [vmem:[#allocation3 + $0xa0] sm:$0xff] %v1534
        %1599 = vst [vmem:[#allocation3 + $0xa8] sm:$0xff] %v1535
        %1600 = vst [vmem:[#allocation3 + $0xb0] sm:$0xff] %v1536
        %1601 = vst [vmem:[#allocation3 + $0xb8] sm:$0xff] %v1537
        %1602 = vst [vmem:[#allocation3 + $0xc0] sm:$0xff] %v1538
        %1603 = vst [vmem:[#allocation3 + $0xc8] sm:$0xff] %v1539
        %1604 = vst [vmem:[#allocation3 + $0xd0] sm:$0xff] %v1540
        %1605 = vst [vmem:[#allocation3 + $0xd8] sm:$0xff] %v1541
        %1606 = vst [vmem:[#allocation3 + $0xe0] sm:$0xff] %v1542
        %1607 = vst [vmem:[#allocation3 + $0xe8] sm:$0xff] %v1543
        %1608 = vst [vmem:[#allocation3 + $0xf0] sm:$0xff] %v1544
        %1609 = vst [vmem:[#allocation3 + $0xf8] sm:$0xff] %v1545
        %v1611 = vperm.slane %v698, 0
        %v1613 = vadd.f32 %v1351, %v1611
        %v1614 = vadd.f32 %v1352, %v1611
        %v1615 = vadd.f32 %v1353, %v1611
        %v1616 = vadd.f32 %v1354, %v1611
        %v1617 = vadd.f32 %v1355, %v1611
        %v1618 = vadd.f32 %v1356, %v1611
        %v1619 = vadd.f32 %v1357, %v1611
        %v1620 = vadd.f32 %v1358, %v1611
        %v1621 = vadd.f32 %v1359, %v1611
        %v1622 = vadd.f32 %v1360, %v1611
        %v1623 = vadd.f32 %v1361, %v1611
        %v1624 = vadd.f32 %v1362, %v1611
        %v1625 = vadd.f32 %v1363, %v1611
        %v1626 = vadd.f32 %v1364, %v1611
        %v1627 = vadd.f32 %v1365, %v1611
        %v1628 = vadd.f32 %v1366, %v1611
        %v1629 = vadd.f32 %v1367, %v1611
        %v1630 = vadd.f32 %v1368, %v1611
        %v1631 = vadd.f32 %v1369, %v1611
        %v1632 = vadd.f32 %v1370, %v1611
        %v1633 = vadd.f32 %v1371, %v1611
        %v1634 = vadd.f32 %v1372, %v1611
        %v1635 = vadd.f32 %v1373, %v1611
        %v1636 = vadd.f32 %v1374, %v1611
        %v1637 = vadd.f32 %v1375, %v1611
        %v1638 = vadd.f32 %v1376, %v1611
        %v1639 = vadd.f32 %v1377, %v1611
        %v1640 = vadd.f32 %v1378, %v1611
        %v1641 = vadd.f32 %v1379, %v1611
        %v1642 = vadd.f32 %v1380, %v1611
        %v1643 = vadd.f32 %v1381, %v1611
        %v1644 = vadd.f32 %v1382, %v1611
        %v1645 = vld [vmem:[#allocation2] sm:$0xff]
        %v1646 = vld [vmem:[#allocation2 + $0x8] sm:$0xff]
        %v1647 = vld [vmem:[#allocation2 + $0x10] sm:$0xff]
        %v1648 = vld [vmem:[#allocation2 + $0x18] sm:$0xff]
        %v1649 = vld [vmem:[#allocation2 + $0x20] sm:$0xff]
        %v1650 = vld [vmem:[#allocation2 + $0x28] sm:$0xff]
        %v1651 = vld [vmem:[#allocation2 + $0x30] sm:$0xff]
        %v1652 = vld [vmem:[#allocation2 + $0x38] sm:$0xff]
        %v1653 = vld [vmem:[#allocation2 + $0x40] sm:$0xff]
        %v1654 = vld [vmem:[#allocation2 + $0x48] sm:$0xff]
        %v1655 = vld [vmem:[#allocation2 + $0x50] sm:$0xff]
        %v1656 = vld [vmem:[#allocation2 + $0x58] sm:$0xff]
        %v1657 = vld [vmem:[#allocation2 + $0x60] sm:$0xff]
        %v1658 = vld [vmem:[#allocation2 + $0x68] sm:$0xff]
        %v1659 = vld [vmem:[#allocation2 + $0x70] sm:$0xff]
        %v1660 = vld [vmem:[#allocation2 + $0x78] sm:$0xff]
        %v1661 = vld [vmem:[#allocation2 + $0x80] sm:$0xff]
        %v1662 = vld [vmem:[#allocation2 + $0x88] sm:$0xff]
        %v1663 = vld [vmem:[#allocation2 + $0x90] sm:$0xff]
        %v1664 = vld [vmem:[#allocation2 + $0x98] sm:$0xff]
        %v1665 = vld [vmem:[#allocation2 + $0xa0] sm:$0xff]
        %v1666 = vld [vmem:[#allocation2 + $0xa8] sm:$0xff]
        %v1667 = vld [vmem:[#allocation2 + $0xb0] sm:$0xff]
        %v1668 = vld [vmem:[#allocation2 + $0xb8] sm:$0xff]
        %v1669 = vld [vmem:[#allocation2 + $0xc0] sm:$0xff]
        %v1670 = vld [vmem:[#allocation2 + $0xc8] sm:$0xff]
        %v1671 = vld [vmem:[#allocation2 + $0xd0] sm:$0xff]
        %v1672 = vld [vmem:[#allocation2 + $0xd8] sm:$0xff]
        %v1673 = vld [vmem:[#allocation2 + $0xe0] sm:$0xff]
        %v1674 = vld [vmem:[#allocation2 + $0xe8] sm:$0xff]
        %v1675 = vld [vmem:[#allocation2 + $0xf0] sm:$0xff]
        %v1676 = vld [vmem:[#allocation2 + $0xf8] sm:$0xff]
        %v1677 = vadd.f32 %v1613, %v1645
        %v1678 = vadd.f32 %v1614, %v1646
        %v1679 = vadd.f32 %v1615, %v1647
        %v1680 = vadd.f32 %v1616, %v1648
        %v1681 = vadd.f32 %v1617, %v1649
        %v1682 = vadd.f32 %v1618, %v1650
        %v1683 = vadd.f32 %v1619, %v1651
        %v1684 = vadd.f32 %v1620, %v1652
        %v1685 = vadd.f32 %v1621, %v1653
        %v1686 = vadd.f32 %v1622, %v1654
        %v1687 = vadd.f32 %v1623, %v1655
        %v1688 = vadd.f32 %v1624, %v1656
        %v1689 = vadd.f32 %v1625, %v1657
        %v1690 = vadd.f32 %v1626, %v1658
        %v1691 = vadd.f32 %v1627, %v1659
        %v1692 = vadd.f32 %v1628, %v1660
        %v1693 = vadd.f32 %v1629, %v1661
        %v1694 = vadd.f32 %v1630, %v1662
        %v1695 = vadd.f32 %v1631, %v1663
        %v1696 = vadd.f32 %v1632, %v1664
        %v1697 = vadd.f32 %v1633, %v1665
        %v1698 = vadd.f32 %v1634, %v1666
        %v1699 = vadd.f32 %v1635, %v1667
        %v1700 = vadd.f32 %v1636, %v1668
        %v1701 = vadd.f32 %v1637, %v1669
        %v1702 = vadd.f32 %v1638, %v1670
        %v1703 = vadd.f32 %v1639, %v1671
        %v1704 = vadd.f32 %v1640, %v1672
        %v1705 = vadd.f32 %v1641, %v1673
        %v1706 = vadd.f32 %v1642, %v1674
        %v1707 = vadd.f32 %v1643, %v1675
        %v1708 = vadd.f32 %v1644, %v1676
        %v1709 = vld [vmem:[#allocation3 + $0x10] sm:$0xff]
        %v1710 = vld [vmem:[#allocation3 + $0x18] sm:$0xff]
        %v1711 = vld [vmem:[#allocation3 + $0x20] sm:$0xff]
        %v1712 = vld [vmem:[#allocation3 + $0x28] sm:$0xff]
        %v1713 = vld [vmem:[#allocation3 + $0x30] sm:$0xff]
        %v1714 = vld [vmem:[#allocation3 + $0x38] sm:$0xff]
        %v1715 = vld [vmem:[#allocation3 + $0x40] sm:$0xff]
        %v1716 = vld [vmem:[#allocation3 + $0x48] sm:$0xff]
        %v1717 = vld [vmem:[#allocation3 + $0x50] sm:$0xff]
        %v1718 = vld [vmem:[#allocation3 + $0x58] sm:$0xff]
        %v1719 = vld [vmem:[#allocation3 + $0x60] sm:$0xff]
        %v1720 = vld [vmem:[#allocation3 + $0x68] sm:$0xff]
        %v1721 = vld [vmem:[#allocation3 + $0x70] sm:$0xff]
        %v1722 = vld [vmem:[#allocation3 + $0x78] sm:$0xff]
        %v1723 = vld [vmem:[#allocation3 + $0x80] sm:$0xff]
        %v1724 = vld [vmem:[#allocation3 + $0x88] sm:$0xff]
        %v1725 = vld [vmem:[#allocation3 + $0x90] sm:$0xff]
        %v1726 = vld [vmem:[#allocation3 + $0x98] sm:$0xff]
        %v1727 = vld [vmem:[#allocation3 + $0xa0] sm:$0xff]
        %v1728 = vld [vmem:[#allocation3 + $0xa8] sm:$0xff]
        %v1729 = vld [vmem:[#allocation3 + $0xb0] sm:$0xff]
        %v1730 = vld [vmem:[#allocation3 + $0xb8] sm:$0xff]
        %v1731 = vld [vmem:[#allocation3 + $0xc0] sm:$0xff]
        %v1732 = vld [vmem:[#allocation3 + $0xc8] sm:$0xff]
        %v1733 = vld [vmem:[#allocation3 + $0xd0] sm:$0xff]
        %v1734 = vld [vmem:[#allocation3 + $0xd8] sm:$0xff]
        %v1735 = vld [vmem:[#allocation3 + $0xe0] sm:$0xff]
        %v1736 = vld [vmem:[#allocation3 + $0xe8] sm:$0xff]
        %v1737 = vld [vmem:[#allocation3 + $0xf0] sm:$0xff]
        %v1738 = vld [vmem:[#allocation3 + $0xf8] sm:$0xff]
        %v1739 = vld [vmem:[#allocation3 + $0x100] sm:$0xff]
        %v1740 = vld [vmem:[#allocation3 + $0x108] sm:$0xff]
        %v1741 = vadd.f32 %v1677, %v1709
        %v1742 = vadd.f32 %v1678, %v1710
        %v1743 = vadd.f32 %v1679, %v1711
        %v1744 = vadd.f32 %v1680, %v1712
        %v1745 = vadd.f32 %v1681, %v1713
        %v1746 = vadd.f32 %v1682, %v1714
        %v1747 = vadd.f32 %v1683, %v1715
        %v1748 = vadd.f32 %v1684, %v1716
        %v1749 = vadd.f32 %v1685, %v1717
        %v1750 = vadd.f32 %v1686, %v1718
        %v1751 = vadd.f32 %v1687, %v1719
        %v1752 = vadd.f32 %v1688, %v1720
        %v1753 = vadd.f32 %v1689, %v1721
        %v1754 = vadd.f32 %v1690, %v1722
        %v1755 = vadd.f32 %v1691, %v1723
        %v1756 = vadd.f32 %v1692, %v1724
        %v1757 = vadd.f32 %v1693, %v1725
        %v1758 = vadd.f32 %v1694, %v1726
        %v1759 = vadd.f32 %v1695, %v1727
        %v1760 = vadd.f32 %v1696, %v1728
        %v1761 = vadd.f32 %v1697, %v1729
        %v1762 = vadd.f32 %v1698, %v1730
        %v1763 = vadd.f32 %v1699, %v1731
        %v1764 = vadd.f32 %v1700, %v1732
        %v1765 = vadd.f32 %v1701, %v1733
        %v1766 = vadd.f32 %v1702, %v1734
        %v1767 = vadd.f32 %v1703, %v1735
        %v1768 = vadd.f32 %v1704, %v1736
        %v1769 = vadd.f32 %v1705, %v1737
        %v1770 = vadd.f32 %v1706, %v1738
        %v1771 = vadd.f32 %v1707, %v1739
        %v1772 = vadd.f32 %v1708, %v1740
        %1773 = vst [vmem:[%s207] sm:$0xff] %v1741
        %1774 = vst [vmem:[%s207 + $0x8] sm:$0xff] %v1742
        %1775 = vst [vmem:[%s207 + $0x10] sm:$0xff] %v1743
        %1776 = vst [vmem:[%s207 + $0x18] sm:$0xff] %v1744
        %1777 = vst [vmem:[%s207 + $0x20] sm:$0xff] %v1745
        %1778 = vst [vmem:[%s207 + $0x28] sm:$0xff] %v1746
        %1779 = vst [vmem:[%s207 + $0x30] sm:$0xff] %v1747
        %1780 = vst [vmem:[%s207 + $0x38] sm:$0xff] %v1748
        %1781 = vst [vmem:[%s207 + $0x40] sm:$0xff] %v1749
        %1782 = vst [vmem:[%s207 + $0x48] sm:$0xff] %v1750
        %1783 = vst [vmem:[%s207 + $0x50] sm:$0xff] %v1751
        %1784 = vst [vmem:[%s207 + $0x58] sm:$0xff] %v1752
        %1785 = vst [vmem:[%s207 + $0x60] sm:$0xff] %v1753
        %1786 = vst [vmem:[%s207 + $0x68] sm:$0xff] %v1754
        %1787 = vst [vmem:[%s207 + $0x70] sm:$0xff] %v1755
        %1788 = vst [vmem:[%s207 + $0x78] sm:$0xff] %v1756
        %1789 = vst [vmem:[%s207 + $0x80] sm:$0xff] %v1757
        %1790 = vst [vmem:[%s207 + $0x88] sm:$0xff] %v1758
        %1791 = vst [vmem:[%s207 + $0x90] sm:$0xff] %v1759
        %1792 = vst [vmem:[%s207 + $0x98] sm:$0xff] %v1760
        %1793 = vst [vmem:[%s207 + $0xa0] sm:$0xff] %v1761
        %1794 = vst [vmem:[%s207 + $0xa8] sm:$0xff] %v1762
        %1795 = vst [vmem:[%s207 + $0xb0] sm:$0xff] %v1763
        %1796 = vst [vmem:[%s207 + $0xb8] sm:$0xff] %v1764
        %1797 = vst [vmem:[%s207 + $0xc0] sm:$0xff] %v1765
        %1798 = vst [vmem:[%s207 + $0xc8] sm:$0xff] %v1766
        %1799 = vst [vmem:[%s207 + $0xd0] sm:$0xff] %v1767
        %1800 = vst [vmem:[%s207 + $0xd8] sm:$0xff] %v1768
        %1801 = vst [vmem:[%s207 + $0xe0] sm:$0xff] %v1769
        %1802 = vst [vmem:[%s207 + $0xe8] sm:$0xff] %v1770
        %1803 = vst [vmem:[%s207 + $0xf0] sm:$0xff] %v1771
        %1804 = vst [vmem:[%s207 + $0xf8] sm:$0xff] %v1772
        %s1805 = sand.u32 %s97, 1
        %s1806 = scalar_lea.sflag [#allocation6], %s1805
        %s1807 = sand.u32 %s97, 1
        %s1808 = smul.addr %s1807, 256
        %s1809 = scalar_lea.vmem [#allocation9], %s1808
        // Predicated region
        $region41: #{tpu_custom_call.1} parent=31 // pred_check
          %p1810 = pneg %p107
        $region42: #{tpu_custom_call.1} parent=31 // pred_check_branch
          %1812 = sbr.rel (%p1810) target = $region44
        $region43: #{tpu_custom_call.1} parent=31 // pred_region
          %1814 = vsyncadd %s1806, 0
          %s1815 = smul.addr %s21, 32
          %s1816 = smul.addr %s1815, 8
          %s1817 = scalar_lea.hbm %s3, %s1816
          %s1818 = sshll.u32 %s1809, 4
          %s1819 = int_to_ptr.vmem [resolvable:$true] %s1818
          %s1820 = sshll.u32 %s1817, 4
          %s1821 = int_to_ptr.hbm [resolvable:$true] %s1820
          %1826 = dma.vmem_to_hbm [thread:$0]  %s1819, 4096, %s1821, %s1806, 128, 128, 8
        $region44: #{tpu_custom_call.1} parent=31 // pred_fallthru
          _
      $region32: #{tpu_custom_call.1} parent=5 // pred_fallthru
        _
      %p1827 = scmp.le.s32.totalorder 2, %s16
      // Predicated region
      $region45: #{tpu_custom_call.1} parent=5 // pred_check
        %p1828 = pneg %p1827
      $region46: #{tpu_custom_call.1} parent=5 // pred_check_branch
        %1830 = sbr.rel (%p1828) target = $region48
      $region47: #{tpu_custom_call.1} parent=5 // pred_region
        %s1831 = ssub.s32 %s16, 2
        // Predicated region
        $region49: #{tpu_custom_call.1} parent=47 // pred_check
          %p1832 = pneg %p113
        $region50: #{tpu_custom_call.1} parent=47 // pred_check_branch
          %1834 = sbr.rel (%p1832) target = $region52
        $region51: #{tpu_custom_call.1} parent=47 // pred_region
          %s1835 = sand.u32 %s98, 1
          %s1836 = scalar_lea.sflag [#allocation6], %s1835
          %s1837 = sand.u32 %s98, 1
          %s1838 = smul.addr %s1837, 256
          %s1839 = scalar_lea.vmem [#allocation9], %s1838
          %1841 = dma.done %s1836, 4096
        $region52: #{tpu_custom_call.1} parent=47 // pred_fallthru
          _
      $region48: #{tpu_custom_call.1} parent=5 // pred_fallthru
        _
    $region6: #{tpu_custom_call.1} parent=1 // loop_footer
      %s20 = sadd.s32 1, %s16
    $region7: #{tpu_custom_call.1} parent=1 // loop_footer_branch
      %15 = sbr.rel target = $region3
    $region8: #{tpu_custom_call.1} parent=1 // loop_exit
      _
    %1842 = vsyncpa [#allocation5], 1
    %s1843 = scalar_lea.sflag [#allocation5], 1
    %1844 = vsyncpa %s1843, 1
    %1845 = vsyncpa [#allocation8], 1
    %1846 = vsyncpa [#allocation6], 1
    %s1847 = scalar_lea.sflag [#allocation6], 1
    %1848 = vsyncpa %s1847, 1

</llo_original>
